<compile_context>
chip_gen: v7x
topology: tpu7x:2x2x1
jax: 0.10.0
libtpu: 0.0.40
codegen_flags: <defaults>
</compile_context>

<pallas_src>
import functools
import math

import jax
import jax.numpy as jnp
from jax.experimental import pallas as pl
from jax.experimental.pallas import tpu as pltpu

LN_EPS = 1e-5
_SQRT_HALF = 1.0 / math.sqrt(2.0)
_NEG_BIG = -1e30


def _layernorm(x, gamma, beta):
    # x: (S, D) f32; gamma/beta: (1, D) f32 -- biased variance (matches PyTorch).
    mean = jnp.mean(x, axis=-1, keepdims=True)
    var = jnp.mean((x - mean) ** 2, axis=-1, keepdims=True)
    return (x - mean) * jax.lax.rsqrt(var + LN_EPS) * gamma + beta


# ---------------------------------------------------------------------------
# Fused encoder-block kernel:
#   y1 = MultiheadAttention(LayerNorm(x)) + x
#   y2 = Linear2(GELU(Linear1(LayerNorm(y1)))) + y1
# ---------------------------------------------------------------------------
def encoder_block_kernel(x_ref,
                         ln1g_ref, ln1b_ref, wqkv_ref, bqkv_ref, wo_ref, bo_ref,
                         ln2g_ref, ln2b_ref, w1_ref, b1_ref, w2_ref, b2_ref,
                         o_ref, heads_ref, *, num_heads, seq_len):
    x = x_ref[0].astype(jnp.float32)          # (Sp, D), Sp = padded seq len
    Sp, D = x.shape
    hd = D // num_heads
    scale = 1.0 / math.sqrt(hd)
    bf16 = jnp.bfloat16

    # ---------------- MSA sub-block ----------------------------------------
    xn = _layernorm(x, ln1g_ref[...], ln1b_ref[...])

    # Fused QKV projection on the MXU: (Sp, D) @ (D, 3D), bf16 in / f32 acc.
    qkv = jnp.dot(xn.astype(bf16), wqkv_ref[...],
                  preferred_element_type=jnp.float32) + bqkv_ref[...]

    # Cast once per slab; transpose K once per block (f32 transpose, then cast).
    q = qkv[:, 0 * D:1 * D].astype(bf16)             # (Sp, D)
    kT = qkv[:, 1 * D:2 * D].T.astype(bf16)          # (D, Sp)
    v = qkv[:, 2 * D:3 * D].astype(bf16)             # (Sp, D)

    # Static key-padding mask: only materialized if the wrapper padded S.
    if Sp > seq_len:
        key_ids = jax.lax.broadcasted_iota(jnp.int32, (1, Sp), 1)
        key_bias = jnp.where(key_ids < seq_len, 0.0, _NEG_BIG)   # (1, Sp) f32
    else:
        key_bias = None

    # Per head: scores -> softmax -> P@V, result stored into the (Sp, D)
    # bf16 scratch at that head's lane slice (ends the head's live ranges).
    for h in range(num_heads):                       # static unrolled loop
        sl = slice(h * hd, (h + 1) * hd)
        s = jnp.dot(q[:, sl], kT[sl, :],
                    preferred_element_type=jnp.float32) * scale   # (Sp, Sp)
        if key_bias is not None:
            s = s + key_bias
        s = s - jnp.max(s, axis=-1, keepdims=True)
        p = jnp.exp(s)                                             # f32 EUP
        # Approx reciprocal runs on the EUP (frees VALU). ~1e-3 rel. error vs
        # exact division; swap for exact division for tight parity tests.
        p = p * pl.reciprocal(jnp.sum(p, axis=-1, keepdims=True), approx=True)
        oh = jnp.dot(p.astype(bf16), v[:, sl],
                     preferred_element_type=jnp.float32)           # (Sp, hd)
        heads_ref[:, sl] = oh.astype(bf16)

    # ONE full-width output projection: (Sp, D) @ (D, D), bf16 in / f32 acc.
    attn = jnp.dot(heads_ref[...], wo_ref[...],
                   preferred_element_type=jnp.float32) + bo_ref[...]
    y1 = attn + x                                                  # residual

    # ---------------- MLP sub-block -----------------------------------------
    yn = _layernorm(y1, ln2g_ref[...], ln2b_ref[...])
    hidden = jnp.dot(yn.astype(bf16), w1_ref[...],
                     preferred_element_type=jnp.float32) + b1_ref[...]
    # exact (erf-based) GELU in f32, matching nn.GELU() default numerics
    hidden = 0.5 * hidden * (1.0 + jax.lax.erf(hidden * _SQRT_HALF))
    out = jnp.dot(hidden.astype(bf16), w2_ref[...],
                  preferred_element_type=jnp.float32) + b2_ref[...]

    o_ref[0] = (out + y1).astype(o_ref.dtype)                      # residual


# ---------------------------------------------------------------------------
# Wrapper
# ---------------------------------------------------------------------------
def _const_spec(shape):
    zeros = (0,) * len(shape)
    return pl.BlockSpec(shape, lambda b, _z=zeros: _z)


def _physical_vmem_bytes():
    try:
        cap = getattr(pltpu.get_tpu_info(), "vmem_capacity_bytes", None)
        if cap:
            return int(cap)
    except Exception:
        pass
    return 64 * 1024 * 1024          # safe on every generation


def _vmem_limit_bytes(S, D, M):
    wbytes = 2 * (D * 3 * D + D * D + D * M + M * D)      # bf16 weights (1 copy)
    pbytes = 4 * (3 * D + 4 * D + M + 4 * D)              # f32 biases / LN params
    act = 4 * S * D                                       # one (S, D) f32 block
    inter = 4 * (S * 3 * D + S * S + S * M + 2 * S * D) + 2 * S * D
    est = 2 * wbytes + 2 * pbytes + 2 * 2 * act + inter   # inputs double-buffered
    cap = _physical_vmem_bytes()
    # 2x slack for Mosaic temporaries; never below the 32 MiB default scoped
    # limit; always leave ~12% of physical VMEM for internal scratch.
    return int(min(max(2 * est, 32 * 1024 * 1024), int(cap * 0.875)))


def prepare_params(params):
    """One-time host-side layout plumbing: bf16 weights for the MXU."""
    bf16 = jnp.bfloat16
    return (
        params["msa_ln_g"], params["msa_ln_b"],
        params["w_qkv"].astype(bf16), params["b_qkv"],
        params["w_out"].astype(bf16), params["b_out"],
        params["mlp_ln_g"], params["mlp_ln_b"],
        params["w1"].astype(bf16), params["b1"],
        params["w2"].astype(bf16), params["b2"],
    )


def transformer_encoder_block(x, prepared_weights, *, num_heads):
    B, S, D = x.shape
    M = prepared_weights[8].shape[1]          # w1: (D, M)

    # Pad S to a multiple of 8 (sublane-dense loads/stores). Padded key
    # columns are masked inside the kernel; padded rows are sliced off here.
    S_pad = ((S + 7) // 8) * 8
    x_in = jnp.pad(x, ((0, 0), (0, S_pad - S), (0, 0))) if S_pad != S else x

    in_specs = [pl.BlockSpec((1, S_pad, D), lambda b: (b, 0, 0))]
    in_specs += [_const_spec(w.shape) for w in prepared_weights]

    kernel = functools.partial(encoder_block_kernel,
                               num_heads=num_heads, seq_len=S)

    # NOTE: grid=(B,) with "parallel" shards batches over v7x's two
    # TensorCores; keep B a multiple of 2 there for full utilization.
    out = pl.pallas_call(
        kernel,
        out_shape=jax.ShapeDtypeStruct((B, S_pad, D), x.dtype),
        grid_spec=pltpu.PrefetchScalarGridSpec(
            num_scalar_prefetch=0,
            grid=(B,),
            in_specs=in_specs,
            out_specs=pl.BlockSpec((1, S_pad, D), lambda b: (b, 0, 0)),
            scratch_shapes=[pltpu.VMEM((S_pad, D), jnp.bfloat16)],
        ),
        compiler_params=pltpu.CompilerParams(
            dimension_semantics=("parallel",),
            vmem_limit_bytes=_vmem_limit_bytes(S_pad, D, M),
        ),
    )(x_in, *prepared_weights)

    return out[:, :S, :] if S_pad != S else out


def init_params(key, embed_dim, mlp_dim):
    ks = jax.random.split(key, 6)
    D, M = embed_dim, mlp_dim

    def lin(k, fan_in, fan_out):
        # Linear weight stored pre-transposed: (in, out)
        bound = 1.0 / math.sqrt(fan_in)
        kw, kb = jax.random.split(k)
        w = jax.random.uniform(kw, (fan_in, fan_out), jnp.float32, -bound, bound)
        b = jax.random.uniform(kb, (1, fan_out), jnp.float32, -bound, bound)
        return w, b

    w_qkv, b_qkv = lin(ks[0], D, 3 * D)     # in_proj of nn.MultiheadAttention
    w_out, b_out = lin(ks[1], D, D)         # out_proj
    w1, b1 = lin(ks[2], D, M)
    w2, b2 = lin(ks[3], M, D)

    return {
        "msa_ln_g": jnp.ones((1, D), jnp.float32),
        "msa_ln_b": jnp.zeros((1, D), jnp.float32),
        "w_qkv": w_qkv, "b_qkv": b_qkv,
        "w_out": w_out, "b_out": b_out,
        "mlp_ln_g": jnp.ones((1, D), jnp.float32),
        "mlp_ln_b": jnp.zeros((1, D), jnp.float32),
        "w1": w1, "b1": b1,
        "w2": w2, "b2": b2,
    }


if __name__ == "__main__":
    B, S, D = 2, 8, 32          # batch, sequence length, embed_dim
    NUM_HEADS = 4
    MLP_DIM = 64

    key = jax.random.PRNGKey(0)
    kx, kp = jax.random.split(key)
    x = jax.random.normal(kx, (B, S, D), jnp.float32)
    params = init_params(kp, D, MLP_DIM)
    prepared = prepare_params(params)       # bf16 weight cast done once, not per call

    y = transformer_encoder_block(x, prepared, num_heads=NUM_HEADS)
    jax.block_until_ready(y)
    assert y.shape == (B, S, D)
    print("KERNEL_OK")
</pallas_src>

<mosaic_0001>
module attributes {stable_mosaic.version = 11 : i64} {
  func.func @encoder_block_kernel(%arg0: i32, %arg1: memref<1x8x32xf32, #tpu.memory_space<vmem>>, %arg2: memref<1x32xf32, #tpu.memory_space<vmem>>, %arg3: memref<1x32xf32, #tpu.memory_space<vmem>>, %arg4: memref<32x96xbf16, #tpu.memory_space<vmem>>, %arg5: memref<1x96xf32, #tpu.memory_space<vmem>>, %arg6: memref<32x32xbf16, #tpu.memory_space<vmem>>, %arg7: memref<1x32xf32, #tpu.memory_space<vmem>>, %arg8: memref<1x32xf32, #tpu.memory_space<vmem>>, %arg9: memref<1x32xf32, #tpu.memory_space<vmem>>, %arg10: memref<32x64xbf16, #tpu.memory_space<vmem>>, %arg11: memref<1x64xf32, #tpu.memory_space<vmem>>, %arg12: memref<64x32xbf16, #tpu.memory_space<vmem>>, %arg13: memref<1x32xf32, #tpu.memory_space<vmem>>, %arg14: memref<1x8x32xf32, #tpu.memory_space<vmem>>, %arg15: memref<8x32xbf16, #tpu.memory_space<vmem>>) attributes {dimension_semantics = [#tpu.dimension_semantics<parallel>], iteration_bounds = array<i64: 2>, scalar_prefetch = 0 : i64, scratch_operands = 1 : i64, tpu.core_type = #tpu.core_type<tc>, window_params = [{transform_indices = @transform_0, window_bounds = array<i64: 1, 8, 32>}, {pipeline_mode = #tpu.pipeline_mode<synchronous>, transform_indices = @transform_1, window_bounds = array<i64: 1, 32>}, {pipeline_mode = #tpu.pipeline_mode<synchronous>, transform_indices = @transform_2, window_bounds = array<i64: 1, 32>}, {pipeline_mode = #tpu.pipeline_mode<synchronous>, transform_indices = @transform_3, window_bounds = array<i64: 32, 96>}, {pipeline_mode = #tpu.pipeline_mode<synchronous>, transform_indices = @transform_4, window_bounds = array<i64: 1, 96>}, {pipeline_mode = #tpu.pipeline_mode<synchronous>, transform_indices = @transform_5, window_bounds = array<i64: 32, 32>}, {pipeline_mode = #tpu.pipeline_mode<synchronous>, transform_indices = @transform_6, window_bounds = array<i64: 1, 32>}, {pipeline_mode = #tpu.pipeline_mode<synchronous>, transform_indices = @transform_7, window_bounds = array<i64: 1, 32>}, {pipeline_mode = #tpu.pipeline_mode<synchronous>, transform_indices = @transform_8, window_bounds = array<i64: 1, 32>}, {pipeline_mode = #tpu.pipeline_mode<synchronous>, transform_indices = @transform_9, window_bounds = array<i64: 32, 64>}, {pipeline_mode = #tpu.pipeline_mode<synchronous>, transform_indices = @transform_10, window_bounds = array<i64: 1, 64>}, {pipeline_mode = #tpu.pipeline_mode<synchronous>, transform_indices = @transform_11, window_bounds = array<i64: 64, 32>}, {pipeline_mode = #tpu.pipeline_mode<synchronous>, transform_indices = @transform_12, window_bounds = array<i64: 1, 32>}, {transform_indices = @transform_13, window_bounds = array<i64: 1, 8, 32>}]} {
    %c0 = arith.constant 0 : index
    %c0_0 = arith.constant 0 : index
    %c0_1 = arith.constant 0 : index
    %0 = vector.load %arg1[%c0, %c0_0, %c0_1] : memref<1x8x32xf32, #tpu.memory_space<vmem>>, vector<1x8x32xf32>
    %1 = vector.shape_cast %0 : vector<1x8x32xf32> to vector<8x32xf32>
    %c0_2 = arith.constant 0 : index
    %c0_3 = arith.constant 0 : index
    %2 = vector.load %arg2[%c0_2, %c0_3] : memref<1x32xf32, #tpu.memory_space<vmem>>, vector<1x32xf32>
    %c0_4 = arith.constant 0 : index
    %c0_5 = arith.constant 0 : index
    %3 = vector.load %arg3[%c0_4, %c0_5] : memref<1x32xf32, #tpu.memory_space<vmem>>, vector<1x32xf32>
    %cst = arith.constant dense<0.000000e+00> : vector<8xf32>
    %4 = vector.multi_reduction <add>, %1, %cst [1] : vector<8x32xf32> to vector<8xf32>
    %5 = vector.shape_cast %4 : vector<8xf32> to vector<8x1xf32>
    %cst_6 = arith.constant 3.200000e+01 : f32
    %6 = vector.broadcast %cst_6 : f32 to vector<8x1xf32>
    %7 = arith.divf %5, %6 : vector<8x1xf32>
    %8 = vector.broadcast %7 : vector<8x1xf32> to vector<8x32xf32>
    %9 = arith.subf %1, %8 : vector<8x32xf32>
    %10 = arith.mulf %9, %9 : vector<8x32xf32>
    %cst_7 = arith.constant dense<0.000000e+00> : vector<8xf32>
    %11 = vector.multi_reduction <add>, %10, %cst_7 [1] : vector<8x32xf32> to vector<8xf32>
    %12 = vector.shape_cast %11 : vector<8xf32> to vector<8x1xf32>
    %cst_8 = arith.constant 3.200000e+01 : f32
    %13 = vector.broadcast %cst_8 : f32 to vector<8x1xf32>
    %14 = arith.divf %12, %13 : vector<8x1xf32>
    %15 = vector.broadcast %7 : vector<8x1xf32> to vector<8x32xf32>
    %16 = arith.subf %1, %15 : vector<8x32xf32>
    %cst_9 = arith.constant 9.99999974E-6 : f32
    %17 = vector.broadcast %cst_9 : f32 to vector<8x1xf32>
    %18 = arith.addf %14, %17 : vector<8x1xf32>
    %19 = math.rsqrt %18 : vector<8x1xf32>
    %20 = vector.broadcast %19 : vector<8x1xf32> to vector<8x32xf32>
    %21 = arith.mulf %16, %20 : vector<8x32xf32>
    %22 = vector.broadcast %2 : vector<1x32xf32> to vector<8x32xf32>
    %23 = arith.mulf %21, %22 : vector<8x32xf32>
    %24 = vector.broadcast %3 : vector<1x32xf32> to vector<8x32xf32>
    %25 = arith.addf %23, %24 : vector<8x32xf32>
    %26 = arith.truncf %25 : vector<8x32xf32> to vector<8x32xbf16>
    %c0_10 = arith.constant 0 : index
    %c0_11 = arith.constant 0 : index
    %27 = vector.load %arg4[%c0_10, %c0_11] : memref<32x96xbf16, #tpu.memory_space<vmem>>, vector<32x96xbf16>
    %cst_12 = arith.constant dense<0.000000e+00> : vector<8x96xf32>
    %28 = tpu.matmul %26, %27, %cst_12 {dimension_numbers = #tpu.dot_dimension_numbers<[1], [0], [0], [1], [0, 0, 1, 1], [], []>} : vector<8x32xbf16>, vector<32x96xbf16>, vector<8x96xf32> -> vector<8x96xf32>
    %c0_13 = arith.constant 0 : index
    %c0_14 = arith.constant 0 : index
    %29 = vector.load %arg5[%c0_13, %c0_14] : memref<1x96xf32, #tpu.memory_space<vmem>>, vector<1x96xf32>
    %30 = vector.broadcast %29 : vector<1x96xf32> to vector<8x96xf32>
    %31 = arith.addf %28, %30 : vector<8x96xf32>
    %32 = vector.extract_strided_slice %31 {offsets = [0, 0], sizes = [8, 32], strides = [1, 1]} : vector<8x96xf32> to vector<8x32xf32>
    %33 = arith.truncf %32 : vector<8x32xf32> to vector<8x32xbf16>
    %34 = vector.extract_strided_slice %31 {offsets = [0, 32], sizes = [8, 32], strides = [1, 1]} : vector<8x96xf32> to vector<8x32xf32>
    %35 = tpu.transpose %34, [1, 0] : vector<8x32xf32> -> vector<32x8xf32>
    %36 = arith.truncf %35 : vector<32x8xf32> to vector<32x8xbf16>
    %37 = vector.extract_strided_slice %31 {offsets = [0, 64], sizes = [8, 32], strides = [1, 1]} : vector<8x96xf32> to vector<8x32xf32>
    %38 = arith.truncf %37 : vector<8x32xf32> to vector<8x32xbf16>
    %39 = vector.extract_strided_slice %33 {offsets = [0, 0], sizes = [8, 8], strides = [1, 1]} : vector<8x32xbf16> to vector<8x8xbf16>
    %40 = vector.extract_strided_slice %36 {offsets = [0, 0], sizes = [8, 8], strides = [1, 1]} : vector<32x8xbf16> to vector<8x8xbf16>
    %cst_15 = arith.constant dense<0.000000e+00> : vector<8x8xf32>
    %41 = tpu.matmul %39, %40, %cst_15 {dimension_numbers = #tpu.dot_dimension_numbers<[1], [0], [0], [1], [0, 0, 1, 1], [], []>} : vector<8x8xbf16>, vector<8x8xbf16>, vector<8x8xf32> -> vector<8x8xf32>
    %cst_16 = arith.constant 0.353553385 : f32
    %42 = vector.broadcast %cst_16 : f32 to vector<8x8xf32>
    %43 = arith.mulf %41, %42 : vector<8x8xf32>
    %cst_17 = arith.constant dense<0xFF800000> : vector<8xf32>
    %44 = vector.multi_reduction <maximumf>, %43, %cst_17 [1] : vector<8x8xf32> to vector<8xf32>
    %45 = vector.shape_cast %44 : vector<8xf32> to vector<8x1xf32>
    %46 = vector.broadcast %45 : vector<8x1xf32> to vector<8x8xf32>
    %47 = arith.subf %43, %46 : vector<8x8xf32>
    %48 = math.exp %47 : vector<8x8xf32>
    %cst_18 = arith.constant dense<0.000000e+00> : vector<8xf32>
    %49 = vector.multi_reduction <add>, %48, %cst_18 [1] : vector<8x8xf32> to vector<8xf32>
    %50 = vector.shape_cast %49 : vector<8xf32> to vector<8x1xf32>
    %51 = tpu.reciprocal %50 {approx = true} : vector<8x1xf32> -> vector<8x1xf32>
    %52 = vector.broadcast %51 : vector<8x1xf32> to vector<8x8xf32>
    %53 = arith.mulf %48, %52 : vector<8x8xf32>
    %54 = arith.truncf %53 : vector<8x8xf32> to vector<8x8xbf16>
    %55 = vector.extract_strided_slice %38 {offsets = [0, 0], sizes = [8, 8], strides = [1, 1]} : vector<8x32xbf16> to vector<8x8xbf16>
    %cst_19 = arith.constant dense<0.000000e+00> : vector<8x8xf32>
    %56 = tpu.matmul %54, %55, %cst_19 {dimension_numbers = #tpu.dot_dimension_numbers<[1], [0], [0], [1], [0, 0, 1, 1], [], []>} : vector<8x8xbf16>, vector<8x8xbf16>, vector<8x8xf32> -> vector<8x8xf32>
    %57 = arith.truncf %56 : vector<8x8xf32> to vector<8x8xbf16>
    %c0_20 = arith.constant 0 : index
    %c0_21 = arith.constant 0 : index
    %58 = vector.load %arg15[%c0_20, %c0_21] : memref<8x32xbf16, #tpu.memory_space<vmem>>, vector<8x8xbf16>
    tpu.vector_store %arg15[%c0_20, %c0_21], %57 {strides = array<i32>} : memref<8x32xbf16, #tpu.memory_space<vmem>>, vector<8x8xbf16>,
    %59 = vector.extract_strided_slice %33 {offsets = [0, 8], sizes = [8, 8], strides = [1, 1]} : vector<8x32xbf16> to vector<8x8xbf16>
    %60 = vector.extract_strided_slice %36 {offsets = [8, 0], sizes = [8, 8], strides = [1, 1]} : vector<32x8xbf16> to vector<8x8xbf16>
    %cst_22 = arith.constant dense<0.000000e+00> : vector<8x8xf32>
    %61 = tpu.matmul %59, %60, %cst_22 {dimension_numbers = #tpu.dot_dimension_numbers<[1], [0], [0], [1], [0, 0, 1, 1], [], []>} : vector<8x8xbf16>, vector<8x8xbf16>, vector<8x8xf32> -> vector<8x8xf32>
    %cst_23 = arith.constant 0.353553385 : f32
    %62 = vector.broadcast %cst_23 : f32 to vector<8x8xf32>
    %63 = arith.mulf %61, %62 : vector<8x8xf32>
    %cst_24 = arith.constant dense<0xFF800000> : vector<8xf32>
    %64 = vector.multi_reduction <maximumf>, %63, %cst_24 [1] : vector<8x8xf32> to vector<8xf32>
    %65 = vector.shape_cast %64 : vector<8xf32> to vector<8x1xf32>
    %66 = vector.broadcast %65 : vector<8x1xf32> to vector<8x8xf32>
    %67 = arith.subf %63, %66 : vector<8x8xf32>
    %68 = math.exp %67 : vector<8x8xf32>
    %cst_25 = arith.constant dense<0.000000e+00> : vector<8xf32>
    %69 = vector.multi_reduction <add>, %68, %cst_25 [1] : vector<8x8xf32> to vector<8xf32>
    %70 = vector.shape_cast %69 : vector<8xf32> to vector<8x1xf32>
    %71 = tpu.reciprocal %70 {approx = true} : vector<8x1xf32> -> vector<8x1xf32>
    %72 = vector.broadcast %71 : vector<8x1xf32> to vector<8x8xf32>
    %73 = arith.mulf %68, %72 : vector<8x8xf32>
    %74 = arith.truncf %73 : vector<8x8xf32> to vector<8x8xbf16>
    %75 = vector.extract_strided_slice %38 {offsets = [0, 8], sizes = [8, 8], strides = [1, 1]} : vector<8x32xbf16> to vector<8x8xbf16>
    %cst_26 = arith.constant dense<0.000000e+00> : vector<8x8xf32>
    %76 = tpu.matmul %74, %75, %cst_26 {dimension_numbers = #tpu.dot_dimension_numbers<[1], [0], [0], [1], [0, 0, 1, 1], [], []>} : vector<8x8xbf16>, vector<8x8xbf16>, vector<8x8xf32> -> vector<8x8xf32>
    %77 = arith.truncf %76 : vector<8x8xf32> to vector<8x8xbf16>
    %c0_27 = arith.constant 0 : index
    %c8 = arith.constant 8 : index
    %78 = vector.load %arg15[%c0_27, %c8] : memref<8x32xbf16, #tpu.memory_space<vmem>>, vector<8x8xbf16>
    tpu.vector_store %arg15[%c0_27, %c8], %77 {strides = array<i32>} : memref<8x32xbf16, #tpu.memory_space<vmem>>, vector<8x8xbf16>,
    %79 = vector.extract_strided_slice %33 {offsets = [0, 16], sizes = [8, 8], strides = [1, 1]} : vector<8x32xbf16> to vector<8x8xbf16>
    %80 = vector.extract_strided_slice %36 {offsets = [16, 0], sizes = [8, 8], strides = [1, 1]} : vector<32x8xbf16> to vector<8x8xbf16>
    %cst_28 = arith.constant dense<0.000000e+00> : vector<8x8xf32>
    %81 = tpu.matmul %79, %80, %cst_28 {dimension_numbers = #tpu.dot_dimension_numbers<[1], [0], [0], [1], [0, 0, 1, 1], [], []>} : vector<8x8xbf16>, vector<8x8xbf16>, vector<8x8xf32> -> vector<8x8xf32>
    %cst_29 = arith.constant 0.353553385 : f32
    %82 = vector.broadcast %cst_29 : f32 to vector<8x8xf32>
    %83 = arith.mulf %81, %82 : vector<8x8xf32>
    %cst_30 = arith.constant dense<0xFF800000> : vector<8xf32>
    %84 = vector.multi_reduction <maximumf>, %83, %cst_30 [1] : vector<8x8xf32> to vector<8xf32>
    %85 = vector.shape_cast %84 : vector<8xf32> to vector<8x1xf32>
    %86 = vector.broadcast %85 : vector<8x1xf32> to vector<8x8xf32>
    %87 = arith.subf %83, %86 : vector<8x8xf32>
    %88 = math.exp %87 : vector<8x8xf32>
    %cst_31 = arith.constant dense<0.000000e+00> : vector<8xf32>
    %89 = vector.multi_reduction <add>, %88, %cst_31 [1] : vector<8x8xf32> to vector<8xf32>
    %90 = vector.shape_cast %89 : vector<8xf32> to vector<8x1xf32>
    %91 = tpu.reciprocal %90 {approx = true} : vector<8x1xf32> -> vector<8x1xf32>
    %92 = vector.broadcast %91 : vector<8x1xf32> to vector<8x8xf32>
    %93 = arith.mulf %88, %92 : vector<8x8xf32>
    %94 = arith.truncf %93 : vector<8x8xf32> to vector<8x8xbf16>
    %95 = vector.extract_strided_slice %38 {offsets = [0, 16], sizes = [8, 8], strides = [1, 1]} : vector<8x32xbf16> to vector<8x8xbf16>
    %cst_32 = arith.constant dense<0.000000e+00> : vector<8x8xf32>
    %96 = tpu.matmul %94, %95, %cst_32 {dimension_numbers = #tpu.dot_dimension_numbers<[1], [0], [0], [1], [0, 0, 1, 1], [], []>} : vector<8x8xbf16>, vector<8x8xbf16>, vector<8x8xf32> -> vector<8x8xf32>
    %97 = arith.truncf %96 : vector<8x8xf32> to vector<8x8xbf16>
    %c0_33 = arith.constant 0 : index
    %c16 = arith.constant 16 : index
    %98 = vector.load %arg15[%c0_33, %c16] : memref<8x32xbf16, #tpu.memory_space<vmem>>, vector<8x8xbf16>
    tpu.vector_store %arg15[%c0_33, %c16], %97 {strides = array<i32>} : memref<8x32xbf16, #tpu.memory_space<vmem>>, vector<8x8xbf16>,
    %99 = vector.extract_strided_slice %33 {offsets = [0, 24], sizes = [8, 8], strides = [1, 1]} : vector<8x32xbf16> to vector<8x8xbf16>
    %100 = vector.extract_strided_slice %36 {offsets = [24, 0], sizes = [8, 8], strides = [1, 1]} : vector<32x8xbf16> to vector<8x8xbf16>
    %cst_34 = arith.constant dense<0.000000e+00> : vector<8x8xf32>
    %101 = tpu.matmul %99, %100, %cst_34 {dimension_numbers = #tpu.dot_dimension_numbers<[1], [0], [0], [1], [0, 0, 1, 1], [], []>} : vector<8x8xbf16>, vector<8x8xbf16>, vector<8x8xf32> -> vector<8x8xf32>
    %cst_35 = arith.constant 0.353553385 : f32
    %102 = vector.broadcast %cst_35 : f32 to vector<8x8xf32>
    %103 = arith.mulf %101, %102 : vector<8x8xf32>
    %cst_36 = arith.constant dense<0xFF800000> : vector<8xf32>
    %104 = vector.multi_reduction <maximumf>, %103, %cst_36 [1] : vector<8x8xf32> to vector<8xf32>
    %105 = vector.shape_cast %104 : vector<8xf32> to vector<8x1xf32>
    %106 = vector.broadcast %105 : vector<8x1xf32> to vector<8x8xf32>
    %107 = arith.subf %103, %106 : vector<8x8xf32>
    %108 = math.exp %107 : vector<8x8xf32>
    %cst_37 = arith.constant dense<0.000000e+00> : vector<8xf32>
    %109 = vector.multi_reduction <add>, %108, %cst_37 [1] : vector<8x8xf32> to vector<8xf32>
    %110 = vector.shape_cast %109 : vector<8xf32> to vector<8x1xf32>
    %111 = tpu.reciprocal %110 {approx = true} : vector<8x1xf32> -> vector<8x1xf32>
    %112 = vector.broadcast %111 : vector<8x1xf32> to vector<8x8xf32>
    %113 = arith.mulf %108, %112 : vector<8x8xf32>
    %114 = arith.truncf %113 : vector<8x8xf32> to vector<8x8xbf16>
    %115 = vector.extract_strided_slice %38 {offsets = [0, 24], sizes = [8, 8], strides = [1, 1]} : vector<8x32xbf16> to vector<8x8xbf16>
    %cst_38 = arith.constant dense<0.000000e+00> : vector<8x8xf32>
    %116 = tpu.matmul %114, %115, %cst_38 {dimension_numbers = #tpu.dot_dimension_numbers<[1], [0], [0], [1], [0, 0, 1, 1], [], []>} : vector<8x8xbf16>, vector<8x8xbf16>, vector<8x8xf32> -> vector<8x8xf32>
    %117 = arith.truncf %116 : vector<8x8xf32> to vector<8x8xbf16>
    %c0_39 = arith.constant 0 : index
    %c24 = arith.constant 24 : index
    %118 = vector.load %arg15[%c0_39, %c24] : memref<8x32xbf16, #tpu.memory_space<vmem>>, vector<8x8xbf16>
    tpu.vector_store %arg15[%c0_39, %c24], %117 {strides = array<i32>} : memref<8x32xbf16, #tpu.memory_space<vmem>>, vector<8x8xbf16>,
    %c0_40 = arith.constant 0 : index
    %c0_41 = arith.constant 0 : index
    %119 = vector.load %arg15[%c0_40, %c0_41] : memref<8x32xbf16, #tpu.memory_space<vmem>>, vector<8x32xbf16>
    %c0_42 = arith.constant 0 : index
    %c0_43 = arith.constant 0 : index
    %120 = vector.load %arg6[%c0_42, %c0_43] : memref<32x32xbf16, #tpu.memory_space<vmem>>, vector<32x32xbf16>
    %cst_44 = arith.constant dense<0.000000e+00> : vector<8x32xf32>
    %121 = tpu.matmul %119, %120, %cst_44 {dimension_numbers = #tpu.dot_dimension_numbers<[1], [0], [0], [1], [0, 0, 1, 1], [], []>} : vector<8x32xbf16>, vector<32x32xbf16>, vector<8x32xf32> -> vector<8x32xf32>
    %c0_45 = arith.constant 0 : index
    %c0_46 = arith.constant 0 : index
    %122 = vector.load %arg7[%c0_45, %c0_46] : memref<1x32xf32, #tpu.memory_space<vmem>>, vector<1x32xf32>
    %123 = vector.broadcast %122 : vector<1x32xf32> to vector<8x32xf32>
    %124 = arith.addf %121, %123 : vector<8x32xf32>
    %125 = arith.addf %124, %1 : vector<8x32xf32>
    %c0_47 = arith.constant 0 : index
    %c0_48 = arith.constant 0 : index
    %126 = vector.load %arg8[%c0_47, %c0_48] : memref<1x32xf32, #tpu.memory_space<vmem>>, vector<1x32xf32>
    %c0_49 = arith.constant 0 : index
    %c0_50 = arith.constant 0 : index
    %127 = vector.load %arg9[%c0_49, %c0_50] : memref<1x32xf32, #tpu.memory_space<vmem>>, vector<1x32xf32>
    %cst_51 = arith.constant dense<0.000000e+00> : vector<8xf32>
    %128 = vector.multi_reduction <add>, %125, %cst_51 [1] : vector<8x32xf32> to vector<8xf32>
    %129 = vector.shape_cast %128 : vector<8xf32> to vector<8x1xf32>
    %cst_52 = arith.constant 3.200000e+01 : f32
    %130 = vector.broadcast %cst_52 : f32 to vector<8x1xf32>
    %131 = arith.divf %129, %130 : vector<8x1xf32>
    %132 = vector.broadcast %131 : vector<8x1xf32> to vector<8x32xf32>
    %133 = arith.subf %125, %132 : vector<8x32xf32>
    %134 = arith.mulf %133, %133 : vector<8x32xf32>
    %cst_53 = arith.constant dense<0.000000e+00> : vector<8xf32>
    %135 = vector.multi_reduction <add>, %134, %cst_53 [1] : vector<8x32xf32> to vector<8xf32>
    %136 = vector.shape_cast %135 : vector<8xf32> to vector<8x1xf32>
    %cst_54 = arith.constant 3.200000e+01 : f32
    %137 = vector.broadcast %cst_54 : f32 to vector<8x1xf32>
    %138 = arith.divf %136, %137 : vector<8x1xf32>
    %139 = vector.broadcast %131 : vector<8x1xf32> to vector<8x32xf32>
    %140 = arith.subf %125, %139 : vector<8x32xf32>
    %cst_55 = arith.constant 9.99999974E-6 : f32
    %141 = vector.broadcast %cst_55 : f32 to vector<8x1xf32>
    %142 = arith.addf %138, %141 : vector<8x1xf32>
    %143 = math.rsqrt %142 : vector<8x1xf32>
    %144 = vector.broadcast %143 : vector<8x1xf32> to vector<8x32xf32>
    %145 = arith.mulf %140, %144 : vector<8x32xf32>
    %146 = vector.broadcast %126 : vector<1x32xf32> to vector<8x32xf32>
    %147 = arith.mulf %145, %146 : vector<8x32xf32>
    %148 = vector.broadcast %127 : vector<1x32xf32> to vector<8x32xf32>
    %149 = arith.addf %147, %148 : vector<8x32xf32>
    %150 = arith.truncf %149 : vector<8x32xf32> to vector<8x32xbf16>
    %c0_56 = arith.constant 0 : index
    %c0_57 = arith.constant 0 : index
    %151 = vector.load %arg10[%c0_56, %c0_57] : memref<32x64xbf16, #tpu.memory_space<vmem>>, vector<32x64xbf16>
    %cst_58 = arith.constant dense<0.000000e+00> : vector<8x64xf32>
    %152 = tpu.matmul %150, %151, %cst_58 {dimension_numbers = #tpu.dot_dimension_numbers<[1], [0], [0], [1], [0, 0, 1, 1], [], []>} : vector<8x32xbf16>, vector<32x64xbf16>, vector<8x64xf32> -> vector<8x64xf32>
    %c0_59 = arith.constant 0 : index
    %c0_60 = arith.constant 0 : index
    %153 = vector.load %arg11[%c0_59, %c0_60] : memref<1x64xf32, #tpu.memory_space<vmem>>, vector<1x64xf32>
    %154 = vector.broadcast %153 : vector<1x64xf32> to vector<8x64xf32>
    %155 = arith.addf %152, %154 : vector<8x64xf32>
    %cst_61 = arith.constant 5.000000e-01 : f32
    %156 = vector.broadcast %cst_61 : f32 to vector<8x64xf32>
    %157 = arith.mulf %156, %155 : vector<8x64xf32>
    %cst_62 = arith.constant 0.707106769 : f32
    %158 = vector.broadcast %cst_62 : f32 to vector<8x64xf32>
    %159 = arith.mulf %155, %158 : vector<8x64xf32>
    %160 = math.erf %159 : vector<8x64xf32>
    %cst_63 = arith.constant 1.000000e+00 : f32
    %161 = vector.broadcast %cst_63 : f32 to vector<8x64xf32>
    %162 = arith.addf %161, %160 : vector<8x64xf32>
    %163 = arith.mulf %157, %162 : vector<8x64xf32>
    %164 = arith.truncf %163 : vector<8x64xf32> to vector<8x64xbf16>
    %c0_64 = arith.constant 0 : index
    %c0_65 = arith.constant 0 : index
    %165 = vector.load %arg12[%c0_64, %c0_65] : memref<64x32xbf16, #tpu.memory_space<vmem>>, vector<64x32xbf16>
    %cst_66 = arith.constant dense<0.000000e+00> : vector<8x32xf32>
    %166 = tpu.matmul %164, %165, %cst_66 {dimension_numbers = #tpu.dot_dimension_numbers<[1], [0], [0], [1], [0, 0, 1, 1], [], []>} : vector<8x64xbf16>, vector<64x32xbf16>, vector<8x32xf32> -> vector<8x32xf32>
    %c0_67 = arith.constant 0 : index
    %c0_68 = arith.constant 0 : index
    %167 = vector.load %arg13[%c0_67, %c0_68] : memref<1x32xf32, #tpu.memory_space<vmem>>, vector<1x32xf32>
    %168 = vector.broadcast %167 : vector<1x32xf32> to vector<8x32xf32>
    %169 = arith.addf %166, %168 : vector<8x32xf32>
    %170 = arith.addf %169, %125 : vector<8x32xf32>
    %c0_69 = arith.constant 0 : index
    %c0_70 = arith.constant 0 : index
    %c0_71 = arith.constant 0 : index
    %171 = vector.load %arg14[%c0_69, %c0_70, %c0_71] : memref<1x8x32xf32, #tpu.memory_space<vmem>>, vector<1x8x32xf32>
    %172 = vector.shape_cast %171 : vector<1x8x32xf32> to vector<8x32xf32>
    %173 = vector.shape_cast %170 : vector<8x32xf32> to vector<1x8x32xf32>
    tpu.vector_store %arg14[%c0_69, %c0_70, %c0_71], %173 {strides = array<i32>} : memref<1x8x32xf32, #tpu.memory_space<vmem>>, vector<1x8x32xf32>,
    return
  }
  func.func @transform_0(%arg0: i32) -> (i32, i32, i32) {
    %c0_i32 = arith.constant 0 : i32
    %c0_i32_0 = arith.constant 0 : i32
    %c0_i32_1 = arith.constant 0 : i32
    return %arg0, %c0_i32, %c0_i32_0 : i32, i32, i32
  }
  func.func @transform_1(%arg0: i32) -> (i32, i32) {
    %c0_i32 = arith.constant 0 : i32
    %c0_i32_0 = arith.constant 0 : i32
    %c0_i32_1 = arith.constant 0 : i32
    return %c0_i32, %c0_i32_0 : i32, i32
  }
  func.func @transform_2(%arg0: i32) -> (i32, i32) {
    %c0_i32 = arith.constant 0 : i32
    %c0_i32_0 = arith.constant 0 : i32
    %c0_i32_1 = arith.constant 0 : i32
    return %c0_i32, %c0_i32_0 : i32, i32
  }
  func.func @transform_3(%arg0: i32) -> (i32, i32) {
    %c0_i32 = arith.constant 0 : i32
    %c0_i32_0 = arith.constant 0 : i32
    %c0_i32_1 = arith.constant 0 : i32
    return %c0_i32, %c0_i32_0 : i32, i32
  }
  func.func @transform_4(%arg0: i32) -> (i32, i32) {
    %c0_i32 = arith.constant 0 : i32
    %c0_i32_0 = arith.constant 0 : i32
    %c0_i32_1 = arith.constant 0 : i32
    return %c0_i32, %c0_i32_0 : i32, i32
  }
  func.func @transform_5(%arg0: i32) -> (i32, i32) {
    %c0_i32 = arith.constant 0 : i32
    %c0_i32_0 = arith.constant 0 : i32
    %c0_i32_1 = arith.constant 0 : i32
    return %c0_i32, %c0_i32_0 : i32, i32
  }
  func.func @transform_6(%arg0: i32) -> (i32, i32) {
    %c0_i32 = arith.constant 0 : i32
    %c0_i32_0 = arith.constant 0 : i32
    %c0_i32_1 = arith.constant 0 : i32
    return %c0_i32, %c0_i32_0 : i32, i32
  }
  func.func @transform_7(%arg0: i32) -> (i32, i32) {
    %c0_i32 = arith.constant 0 : i32
    %c0_i32_0 = arith.constant 0 : i32
    %c0_i32_1 = arith.constant 0 : i32
    return %c0_i32, %c0_i32_0 : i32, i32
  }
  func.func @transform_8(%arg0: i32) -> (i32, i32) {
    %c0_i32 = arith.constant 0 : i32
    %c0_i32_0 = arith.constant 0 : i32
    %c0_i32_1 = arith.constant 0 : i32
    return %c0_i32, %c0_i32_0 : i32, i32
  }
  func.func @transform_9(%arg0: i32) -> (i32, i32) {
    %c0_i32 = arith.constant 0 : i32
    %c0_i32_0 = arith.constant 0 : i32
    %c0_i32_1 = arith.constant 0 : i32
    return %c0_i32, %c0_i32_0 : i32, i32
  }
  func.func @transform_10(%arg0: i32) -> (i32, i32) {
    %c0_i32 = arith.constant 0 : i32
    %c0_i32_0 = arith.constant 0 : i32
    %c0_i32_1 = arith.constant 0 : i32
    return %c0_i32, %c0_i32_0 : i32, i32
  }
  func.func @transform_11(%arg0: i32) -> (i32, i32) {
    %c0_i32 = arith.constant 0 : i32
    %c0_i32_0 = arith.constant 0 : i32
    %c0_i32_1 = arith.constant 0 : i32
    return %c0_i32, %c0_i32_0 : i32, i32
  }
  func.func @transform_12(%arg0: i32) -> (i32, i32) {
    %c0_i32 = arith.constant 0 : i32
    %c0_i32_0 = arith.constant 0 : i32
    %c0_i32_1 = arith.constant 0 : i32
    return %c0_i32, %c0_i32_0 : i32, i32
  }
  func.func @transform_13(%arg0: i32) -> (i32, i32, i32) {
    %c0_i32 = arith.constant 0 : i32
    %c0_i32_0 = arith.constant 0 : i32
    %c0_i32_1 = arith.constant 0 : i32
    return %arg0, %c0_i32, %c0_i32_0 : i32, i32, i32
  }
}

</mosaic_0001>

<llo_original>
// kernel: tpu_custom_call.1
$region0: #{tpu_custom_call.1}
  #allocation0 [shape = 'u32[]', space=smem, size = 0x4, offset = 0x4, fixed_abs, tag = 'smem constant byte address 0x4 - core index']
  #allocation1 [shape = 'u32[144,128]{1,0:T(1,128)}', space=vmem, size = 0x12000, scoped, tag = 'internal scratch']
  #allocation2 [shape = 'bf16[8,32]{1,0:T(8,128)(2,1)}', space=vmem, size = 0x800, scoped, tag = 'scratch operand']
  %s0 = inlined_call_operand.vmem [shape: f32[2,8,32], index: 0, kind: input, shape index: {}]
  %s1 = inlined_call_operand.vmem [shape: f32[1,32], index: 1, kind: input, shape index: {}]
  %s2 = inlined_call_operand.vmem [shape: f32[1,32], index: 2, kind: input, shape index: {}]
  %s3 = inlined_call_operand.vmem [shape: bf16[32,96], index: 3, kind: input, shape index: {}]
  %s4 = inlined_call_operand.hbm [shape: f32[1,96], index: 4, kind: input, shape index: {}]
  %s5 = inlined_call_operand.vmem [shape: bf16[32,32], index: 5, kind: input, shape index: {}]
  %s6 = inlined_call_operand.hbm [shape: f32[1,32], index: 6, kind: input, shape index: {}]
  %s7 = inlined_call_operand.hbm [shape: f32[1,32], index: 7, kind: input, shape index: {}]
  %s8 = inlined_call_operand.hbm [shape: f32[1,32], index: 8, kind: input, shape index: {}]
  %s9 = inlined_call_operand.vmem [shape: bf16[32,64], index: 9, kind: input, shape index: {}]
  %s10 = inlined_call_operand.vmem [shape: f32[1,64], index: 10, kind: input, shape index: {}]
  %s11 = inlined_call_operand.vmem [shape: bf16[64,32], index: 11, kind: input, shape index: {}]
  %s12 = inlined_call_operand.vmem [shape: f32[1,32], index: 12, kind: input, shape index: {}]
  %s13 = inlined_call_operand.hbm [shape: f32[2,8,32], index: 13, kind: output, shape index: {}]
  %s14 = sld [smem:[#allocation0]]
  $region101: #{tpu_custom_call.1} parent=0
    _
  %s16 = ssub.s32 1, %s14
  %s17 = scalar_select 0, %s16, %s14
  $region1: #{tpu_custom_call.1} parent=0
    #allocation3 [shape = 'u8[512]{0}', space=vmem, size = 0x400, scoped, tag = 'input window, operand 4, single buffered']
    #allocation4 [shape = 's32[2]{0}', space=sflag, size = 0x8, scoped, tag = 'scoped memory for tpu_custom_call.1']
    #allocation5 [shape = 's32[2]{0}', space=sflag, size = 0x8, scoped, tag = 'scoped memory for tpu_custom_call.1']
    #allocation6 [shape = 'u8[512]{0}', space=vmem, size = 0x400, scoped, tag = 'input window, operand 6, single buffered']
    #allocation7 [shape = 's32[1]{0}', space=sflag, size = 0x4, scoped, tag = 'scoped memory for tpu_custom_call.1']
    #allocation8 [shape = 'u8[512]{0}', space=vmem, size = 0x400, scoped, tag = 'input window, operand 7, single buffered']
    #allocation9 [shape = 'u8[512]{0}', space=vmem, size = 0x400, scoped, tag = 'input window, operand 8, single buffered']
    #allocation10 [shape = 's32[1]{0}', space=sflag, size = 0x4, scoped, tag = 'scoped memory for tpu_custom_call.1']
    #allocation11 [shape = 'u8[8192]{0}', space=vmem, size = 0x2000, scoped, tag = 'output window, operand 0']
    %18 = vsyncpa [#allocation4], 0
    %19 = vsyncpa [#allocation7], 0
    %20 = vsyncpa [#allocation10], 0
    %21 = vsyncpa [#allocation5], 0
    %s22 = scalar_lea.sflag [#allocation5], 1
    %23 = vsyncpa %s22, 0
    loop: start=0, step=1, limit=4
    $region2: #{tpu_custom_call.1} parent=1 // loop_pre_header
      _
    $region3: #{tpu_custom_call.1} parent=1 // loop_header
      %s25 = sphi 0, %s29
      %p26 = scmp.ge.s32.totalorder %s25, 4
      %s35 = sphi 0, %s37
      %s38 = sphi 0, %s35
      %s39 = sphi 0, %s38
      %s55 = sphi 0, %s39
      %s59 = sphi 0, %s59
      %s61 = sphi 0, %s59
      %s62 = sphi 0, %s61
      %s76 = sphi 0, %s62
      %s80 = sphi 0, %s80
      %s82 = sphi 0, %s80
      %s83 = sphi 0, %s82
      %s97 = sphi 0, %s83
      %s101 = sphi 0, %s101
      %s103 = sphi 0, %s101
      %s104 = sphi 0, %s103
      %s118 = sphi 0, %s104
      %s122 = sphi 0, %s122
      %s124 = sphi 0, %s122
      %s125 = sphi 0, %s124
      %s139 = sphi 0, %s125
      %s143 = sphi 0, %s143
      %s145 = sphi 0, %s143
      %s146 = sphi 0, %s145
      %s160 = sphi 0, %s146
      %s164 = sphi 0, %s164
      %s166 = sphi 0, %s164
      %s167 = sphi 0, %s166
      %s181 = sphi 0, %s167
      %s185 = sphi 0, %s185
      %s187 = sphi 0, %s185
      %s188 = sphi 0, %s187
      %s202 = sphi 0, %s188
      %s206 = sphi 0, %s206
      %s208 = sphi 0, %s206
      %s209 = sphi 0, %s208
      %s223 = sphi 0, %s209
      %s227 = sphi 0, %s227
      %s229 = sphi 0, %s227
      %s230 = sphi 0, %s229
      %s244 = sphi 0, %s230
      %s248 = sphi 0, %s248
      %s250 = sphi 0, %s248
      %s251 = sphi 0, %s250
      %s265 = sphi 0, %s251
      %s269 = sphi 0, %s269
      %s271 = sphi 0, %s269
      %s272 = sphi 0, %s271
      %s286 = sphi 0, %s272
      %s290 = sphi 0, %s290
      %s292 = sphi 0, %s290
      %s293 = sphi 0, %s292
      %s307 = sphi 0, %s293
      %s313 = sphi 0, %s315
      %s316 = sphi 0, %s313
      %s317 = sphi 0, %s316
      %s333 = sphi 0, %s317
    $region4: #{tpu_custom_call.1} parent=1 // loop_header_branch
      %28 = sbr.rel (%p26) target = $region8
    $region5: #{tpu_custom_call.1} parent=1 // loop_body
      %s30 = ssub.s32 %s25, 1
      %s31 = ssub.s32 %s25, 2
      %s32 = sadd.s32 %s25, 1
      %s33 = ssub.s32 %s25, %s32
      %p34 = scmp.eq.s32.totalorder %s33, 0
      %s36 = sadd.s32 %s35, 1
      %s37 = scalar_select %p34, %s35, %s36
      %p40 = pneg %p34
      %p41 = scmp.eq.s32.totalorder %s25, 1
      %p42 = por %p40, %p41
      %p43 = scmp.ne.s32.totalorder %s35, %s38
      %p44 = scmp.eq.s32.totalorder %s25, 0
      %p45 = por %p43, %p44
      %p46 = scmp.ne.s32.totalorder %s35, %s38
      %p47 = scmp.eq.s32.totalorder %s30, 1
      %p48 = por %p46, %p47
      %p49 = scmp.ne.s32.totalorder %s38, %s39
      %p50 = scmp.eq.s32.totalorder %s30, 0
      %p51 = por %p49, %p50
      %p52 = scmp.ne.s32.totalorder %s38, %s39
      %p53 = scmp.eq.s32.totalorder %s31, 1
      %p54 = por %p52, %p53
      %p56 = scmp.ne.s32.totalorder %s39, %s55
      %p57 = scmp.eq.s32.totalorder %s31, 0
      %p58 = por %p56, %p57
      %s60 = sadd.s32 %s59, 1
      %p63 = scmp.eq.s32.totalorder %s25, 1
      %p64 = scmp.ne.s32.totalorder %s59, %s61
      %p65 = scmp.eq.s32.totalorder %s25, 0
      %p66 = por %p64, %p65
      %p67 = scmp.ne.s32.totalorder %s59, %s61
      %p68 = scmp.eq.s32.totalorder %s30, 1
      %p69 = por %p67, %p68
      %p70 = scmp.ne.s32.totalorder %s61, %s62
      %p71 = scmp.eq.s32.totalorder %s30, 0
      %p72 = por %p70, %p71
      %p73 = scmp.ne.s32.totalorder %s61, %s62
      %p74 = scmp.eq.s32.totalorder %s31, 1
      %p75 = por %p73, %p74
      %p77 = scmp.ne.s32.totalorder %s62, %s76
      %p78 = scmp.eq.s32.totalorder %s31, 0
      %p79 = por %p77, %p78
      %s81 = sadd.s32 %s80, 1
      %p84 = scmp.eq.s32.totalorder %s25, 1
      %p85 = scmp.ne.s32.totalorder %s80, %s82
      %p86 = scmp.eq.s32.totalorder %s25, 0
      %p87 = por %p85, %p86
      %p88 = scmp.ne.s32.totalorder %s80, %s82
      %p89 = scmp.eq.s32.totalorder %s30, 1
      %p90 = por %p88, %p89
      %p91 = scmp.ne.s32.totalorder %s82, %s83
      %p92 = scmp.eq.s32.totalorder %s30, 0
      %p93 = por %p91, %p92
      %p94 = scmp.ne.s32.totalorder %s82, %s83
      %p95 = scmp.eq.s32.totalorder %s31, 1
      %p96 = por %p94, %p95
      %p98 = scmp.ne.s32.totalorder %s83, %s97
      %p99 = scmp.eq.s32.totalorder %s31, 0
      %p100 = por %p98, %p99
      %s102 = sadd.s32 %s101, 1
      %p105 = scmp.eq.s32.totalorder %s25, 1
      %p106 = scmp.ne.s32.totalorder %s101, %s103
      %p107 = scmp.eq.s32.totalorder %s25, 0
      %p108 = por %p106, %p107
      %p109 = scmp.ne.s32.totalorder %s101, %s103
      %p110 = scmp.eq.s32.totalorder %s30, 1
      %p111 = por %p109, %p110
      %p112 = scmp.ne.s32.totalorder %s103, %s104
      %p113 = scmp.eq.s32.totalorder %s30, 0
      %p114 = por %p112, %p113
      %p115 = scmp.ne.s32.totalorder %s103, %s104
      %p116 = scmp.eq.s32.totalorder %s31, 1
      %p117 = por %p115, %p116
      %p119 = scmp.ne.s32.totalorder %s104, %s118
      %p120 = scmp.eq.s32.totalorder %s31, 0
      %p121 = por %p119, %p120
      %s123 = sadd.s32 %s122, 1
      %p126 = scmp.eq.s32.totalorder %s25, 1
      %p127 = scmp.ne.s32.totalorder %s122, %s124
      %p128 = scmp.eq.s32.totalorder %s25, 0
      %p129 = por %p127, %p128
      %p130 = scmp.ne.s32.totalorder %s122, %s124
      %p131 = scmp.eq.s32.totalorder %s30, 1
      %p132 = por %p130, %p131
      %p133 = scmp.ne.s32.totalorder %s124, %s125
      %p134 = scmp.eq.s32.totalorder %s30, 0
      %p135 = por %p133, %p134
      %p136 = scmp.ne.s32.totalorder %s124, %s125
      %p137 = scmp.eq.s32.totalorder %s31, 1
      %p138 = por %p136, %p137
      %p140 = scmp.ne.s32.totalorder %s125, %s139
      %p141 = scmp.eq.s32.totalorder %s31, 0
      %p142 = por %p140, %p141
      %s144 = sadd.s32 %s143, 1
      %p147 = scmp.eq.s32.totalorder %s25, 1
      %p148 = scmp.ne.s32.totalorder %s143, %s145
      %p149 = scmp.eq.s32.totalorder %s25, 0
      %p150 = por %p148, %p149
      %p151 = scmp.ne.s32.totalorder %s143, %s145
      %p152 = scmp.eq.s32.totalorder %s30, 1
      %p153 = por %p151, %p152
      %p154 = scmp.ne.s32.totalorder %s145, %s146
      %p155 = scmp.eq.s32.totalorder %s30, 0
      %p156 = por %p154, %p155
      %p157 = scmp.ne.s32.totalorder %s145, %s146
      %p158 = scmp.eq.s32.totalorder %s31, 1
      %p159 = por %p157, %p158
      %p161 = scmp.ne.s32.totalorder %s146, %s160
      %p162 = scmp.eq.s32.totalorder %s31, 0
      %p163 = por %p161, %p162
      %s165 = sadd.s32 %s164, 1
      %p168 = scmp.eq.s32.totalorder %s25, 1
      %p169 = scmp.ne.s32.totalorder %s164, %s166
      %p170 = scmp.eq.s32.totalorder %s25, 0
      %p171 = por %p169, %p170
      %p172 = scmp.ne.s32.totalorder %s164, %s166
      %p173 = scmp.eq.s32.totalorder %s30, 1
      %p174 = por %p172, %p173
      %p175 = scmp.ne.s32.totalorder %s166, %s167
      %p176 = scmp.eq.s32.totalorder %s30, 0
      %p177 = por %p175, %p176
      %p178 = scmp.ne.s32.totalorder %s166, %s167
      %p179 = scmp.eq.s32.totalorder %s31, 1
      %p180 = por %p178, %p179
      %p182 = scmp.ne.s32.totalorder %s167, %s181
      %p183 = scmp.eq.s32.totalorder %s31, 0
      %p184 = por %p182, %p183
      %s186 = sadd.s32 %s185, 1
      %p189 = scmp.eq.s32.totalorder %s25, 1
      %p190 = scmp.ne.s32.totalorder %s185, %s187
      %p191 = scmp.eq.s32.totalorder %s25, 0
      %p192 = por %p190, %p191
      %p193 = scmp.ne.s32.totalorder %s185, %s187
      %p194 = scmp.eq.s32.totalorder %s30, 1
      %p195 = por %p193, %p194
      %p196 = scmp.ne.s32.totalorder %s187, %s188
      %p197 = scmp.eq.s32.totalorder %s30, 0
      %p198 = por %p196, %p197
      %p199 = scmp.ne.s32.totalorder %s187, %s188
      %p200 = scmp.eq.s32.totalorder %s31, 1
      %p201 = por %p199, %p200
      %p203 = scmp.ne.s32.totalorder %s188, %s202
      %p204 = scmp.eq.s32.totalorder %s31, 0
      %p205 = por %p203, %p204
      %s207 = sadd.s32 %s206, 1
      %p210 = scmp.eq.s32.totalorder %s25, 1
      %p211 = scmp.ne.s32.totalorder %s206, %s208
      %p212 = scmp.eq.s32.totalorder %s25, 0
      %p213 = por %p211, %p212
      %p214 = scmp.ne.s32.totalorder %s206, %s208
      %p215 = scmp.eq.s32.totalorder %s30, 1
      %p216 = por %p214, %p215
      %p217 = scmp.ne.s32.totalorder %s208, %s209
      %p218 = scmp.eq.s32.totalorder %s30, 0
      %p219 = por %p217, %p218
      %p220 = scmp.ne.s32.totalorder %s208, %s209
      %p221 = scmp.eq.s32.totalorder %s31, 1
      %p222 = por %p220, %p221
      %p224 = scmp.ne.s32.totalorder %s209, %s223
      %p225 = scmp.eq.s32.totalorder %s31, 0
      %p226 = por %p224, %p225
      %s228 = sadd.s32 %s227, 1
      %p231 = scmp.eq.s32.totalorder %s25, 1
      %p232 = scmp.ne.s32.totalorder %s227, %s229
      %p233 = scmp.eq.s32.totalorder %s25, 0
      %p234 = por %p232, %p233
      %p235 = scmp.ne.s32.totalorder %s227, %s229
      %p236 = scmp.eq.s32.totalorder %s30, 1
      %p237 = por %p235, %p236
      %p238 = scmp.ne.s32.totalorder %s229, %s230
      %p239 = scmp.eq.s32.totalorder %s30, 0
      %p240 = por %p238, %p239
      %p241 = scmp.ne.s32.totalorder %s229, %s230
      %p242 = scmp.eq.s32.totalorder %s31, 1
      %p243 = por %p241, %p242
      %p245 = scmp.ne.s32.totalorder %s230, %s244
      %p246 = scmp.eq.s32.totalorder %s31, 0
      %p247 = por %p245, %p246
      %s249 = sadd.s32 %s248, 1
      %p252 = scmp.eq.s32.totalorder %s25, 1
      %p253 = scmp.ne.s32.totalorder %s248, %s250
      %p254 = scmp.eq.s32.totalorder %s25, 0
      %p255 = por %p253, %p254
      %p256 = scmp.ne.s32.totalorder %s248, %s250
      %p257 = scmp.eq.s32.totalorder %s30, 1
      %p258 = por %p256, %p257
      %p259 = scmp.ne.s32.totalorder %s250, %s251
      %p260 = scmp.eq.s32.totalorder %s30, 0
      %p261 = por %p259, %p260
      %p262 = scmp.ne.s32.totalorder %s250, %s251
      %p263 = scmp.eq.s32.totalorder %s31, 1
      %p264 = por %p262, %p263
      %p266 = scmp.ne.s32.totalorder %s251, %s265
      %p267 = scmp.eq.s32.totalorder %s31, 0
      %p268 = por %p266, %p267
      %s270 = sadd.s32 %s269, 1
      %p273 = scmp.eq.s32.totalorder %s25, 1
      %p274 = scmp.ne.s32.totalorder %s269, %s271
      %p275 = scmp.eq.s32.totalorder %s25, 0
      %p276 = por %p274, %p275
      %p277 = scmp.ne.s32.totalorder %s269, %s271
      %p278 = scmp.eq.s32.totalorder %s30, 1
      %p279 = por %p277, %p278
      %p280 = scmp.ne.s32.totalorder %s271, %s272
      %p281 = scmp.eq.s32.totalorder %s30, 0
      %p282 = por %p280, %p281
      %p283 = scmp.ne.s32.totalorder %s271, %s272
      %p284 = scmp.eq.s32.totalorder %s31, 1
      %p285 = por %p283, %p284
      %p287 = scmp.ne.s32.totalorder %s272, %s286
      %p288 = scmp.eq.s32.totalorder %s31, 0
      %p289 = por %p287, %p288
      %s291 = sadd.s32 %s290, 1
      %p294 = scmp.eq.s32.totalorder %s25, 1
      %p295 = scmp.ne.s32.totalorder %s290, %s292
      %p296 = scmp.eq.s32.totalorder %s25, 0
      %p297 = por %p295, %p296
      %p298 = scmp.ne.s32.totalorder %s290, %s292
      %p299 = scmp.eq.s32.totalorder %s30, 1
      %p300 = por %p298, %p299
      %p301 = scmp.ne.s32.totalorder %s292, %s293
      %p302 = scmp.eq.s32.totalorder %s30, 0
      %p303 = por %p301, %p302
      %p304 = scmp.ne.s32.totalorder %s292, %s293
      %p305 = scmp.eq.s32.totalorder %s31, 1
      %p306 = por %p304, %p305
      %p308 = scmp.ne.s32.totalorder %s293, %s307
      %p309 = scmp.eq.s32.totalorder %s31, 0
      %p310 = por %p308, %p309
      %s311 = ssub.s32 %s25, %s32
      %p312 = scmp.eq.s32.totalorder %s311, 0
      %s314 = sadd.s32 %s313, 1
      %s315 = scalar_select %p312, %s313, %s314
      %p318 = pneg %p312
      %p319 = scmp.eq.s32.totalorder %s25, 1
      %p320 = por %p318, %p319
      %p321 = scmp.ne.s32.totalorder %s313, %s316
      %p322 = scmp.eq.s32.totalorder %s25, 0
      %p323 = por %p321, %p322
      %p324 = scmp.ne.s32.totalorder %s313, %s316
      %p325 = scmp.eq.s32.totalorder %s30, 1
      %p326 = por %p324, %p325
      %p327 = scmp.ne.s32.totalorder %s316, %s317
      %p328 = scmp.eq.s32.totalorder %s30, 0
      %p329 = por %p327, %p328
      %p330 = scmp.ne.s32.totalorder %s316, %s317
      %p331 = scmp.eq.s32.totalorder %s31, 1
      %p332 = por %p330, %p331
      %p334 = scmp.ne.s32.totalorder %s317, %s333
      %p335 = scmp.eq.s32.totalorder %s31, 0
      %p336 = por %p334, %p335
      %p337 = scmp.le.s32.totalorder 1, %s25
      %p338 = scmp.lt.s32.totalorder %s25, 3
      %p339 = pnand %p337, %p338
      %p340 = pneg %p339
      // Predicated region
      $region9: #{tpu_custom_call.1} parent=5 // pred_check
        _
      $region10: #{tpu_custom_call.1} parent=5 // pred_check_branch
        %342 = sbr.rel (%p339) target = $region12
      $region11: #{tpu_custom_call.1} parent=5 // pred_region
        %s343 = ssub.s32 %s25, 1
        // Predicated region
        $region13: #{tpu_custom_call.1} parent=11 // pred_check
          %p344 = pneg %p72
        $region14: #{tpu_custom_call.1} parent=11 // pred_check_branch
          %346 = sbr.rel (%p344) target = $region16
        $region15: #{tpu_custom_call.1} parent=11 // pred_region
          _
        $region16: #{tpu_custom_call.1} parent=11 // pred_fallthru
          _
        // Predicated region
        $region17: #{tpu_custom_call.1} parent=11 // pred_check
          %p347 = pneg %p93
        $region18: #{tpu_custom_call.1} parent=11 // pred_check_branch
          %349 = sbr.rel (%p347) target = $region20
        $region19: #{tpu_custom_call.1} parent=11 // pred_region
          _
        $region20: #{tpu_custom_call.1} parent=11 // pred_fallthru
          _
        // Predicated region
        $region21: #{tpu_custom_call.1} parent=11 // pred_check
          %p350 = pneg %p114
        $region22: #{tpu_custom_call.1} parent=11 // pred_check_branch
          %352 = sbr.rel (%p350) target = $region24
        $region23: #{tpu_custom_call.1} parent=11 // pred_region
          _
        $region24: #{tpu_custom_call.1} parent=11 // pred_fallthru
          _
        // Predicated region
        $region25: #{tpu_custom_call.1} parent=11 // pred_check
          %p353 = pneg %p135
        $region26: #{tpu_custom_call.1} parent=11 // pred_check_branch
          %355 = sbr.rel (%p353) target = $region28
        $region27: #{tpu_custom_call.1} parent=11 // pred_region
          %s357 = ssub.s32 16, 16
          %358 = vsyncadd [#allocation4], %s357
          %s360 = sshll.u32 [#allocation3], 4
          %s361 = int_to_ptr.vmem [resolvable:$true] %s360
          %363 = dma.hbm_to_vmem [thread:$0]  %s4, 16, %s361, [#allocation4]
        $region28: #{tpu_custom_call.1} parent=11 // pred_fallthru
          _
        // Predicated region
        $region29: #{tpu_custom_call.1} parent=11 // pred_check
          %p364 = pneg %p156
        $region30: #{tpu_custom_call.1} parent=11 // pred_check_branch
          %366 = sbr.rel (%p364) target = $region32
        $region31: #{tpu_custom_call.1} parent=11 // pred_region
          _
        $region32: #{tpu_custom_call.1} parent=11 // pred_fallthru
          _
        // Predicated region
        $region33: #{tpu_custom_call.1} parent=11 // pred_check
          %p367 = pneg %p177
        $region34: #{tpu_custom_call.1} parent=11 // pred_check_branch
          %369 = sbr.rel (%p367) target = $region36
        $region35: #{tpu_custom_call.1} parent=11 // pred_region
          %s371 = ssub.s32 16, 16
          %372 = vsyncadd [#allocation7], %s371
          %s374 = sshll.u32 [#allocation6], 4
          %s375 = int_to_ptr.vmem [resolvable:$true] %s374
          %377 = dma.hbm_to_vmem [thread:$0]  %s6, 16, %s375, [#allocation7]
        $region36: #{tpu_custom_call.1} parent=11 // pred_fallthru
          _
        // Predicated region
        $region37: #{tpu_custom_call.1} parent=11 // pred_check
          %p378 = pneg %p198
        $region38: #{tpu_custom_call.1} parent=11 // pred_check_branch
          %380 = sbr.rel (%p378) target = $region40
        $region39: #{tpu_custom_call.1} parent=11 // pred_region
          %s382 = ssub.s32 16, 16
          %383 = vsyncadd [#allocation7], %s382
          %s385 = sshll.u32 [#allocation8], 4
          %s386 = int_to_ptr.vmem [resolvable:$true] %s385
          %388 = dma.hbm_to_vmem [thread:$0]  %s7, 16, %s386, [#allocation7]
        $region40: #{tpu_custom_call.1} parent=11 // pred_fallthru
          _
        // Predicated region
        $region41: #{tpu_custom_call.1} parent=11 // pred_check
          %p389 = pneg %p219
        $region42: #{tpu_custom_call.1} parent=11 // pred_check_branch
          %391 = sbr.rel (%p389) target = $region44
        $region43: #{tpu_custom_call.1} parent=11 // pred_region
          %s393 = ssub.s32 16, 16
          %394 = vsyncadd [#allocation10], %s393
          %s396 = sshll.u32 [#allocation9], 4
          %s397 = int_to_ptr.vmem [resolvable:$true] %s396
          %399 = dma.hbm_to_vmem [thread:$0]  %s8, 16, %s397, [#allocation10]
        $region44: #{tpu_custom_call.1} parent=11 // pred_fallthru
          _
        // Predicated region
        $region45: #{tpu_custom_call.1} parent=11 // pred_check
          %p400 = pneg %p240
        $region46: #{tpu_custom_call.1} parent=11 // pred_check_branch
          %402 = sbr.rel (%p400) target = $region48
        $region47: #{tpu_custom_call.1} parent=11 // pred_region
          _
        $region48: #{tpu_custom_call.1} parent=11 // pred_fallthru
          _
        // Predicated region
        $region49: #{tpu_custom_call.1} parent=11 // pred_check
          %p403 = pneg %p261
        $region50: #{tpu_custom_call.1} parent=11 // pred_check_branch
          %405 = sbr.rel (%p403) target = $region52
        $region51: #{tpu_custom_call.1} parent=11 // pred_region
          _
        $region52: #{tpu_custom_call.1} parent=11 // pred_fallthru
          _
        // Predicated region
        $region53: #{tpu_custom_call.1} parent=11 // pred_check
          %p406 = pneg %p282
        $region54: #{tpu_custom_call.1} parent=11 // pred_check_branch
          %408 = sbr.rel (%p406) target = $region56
        $region55: #{tpu_custom_call.1} parent=11 // pred_region
          _
        $region56: #{tpu_custom_call.1} parent=11 // pred_fallthru
          _
        // Predicated region
        $region57: #{tpu_custom_call.1} parent=11 // pred_check
          %p409 = pneg %p303
        $region58: #{tpu_custom_call.1} parent=11 // pred_check_branch
          %411 = sbr.rel (%p409) target = $region60
        $region59: #{tpu_custom_call.1} parent=11 // pred_region
          _
        $region60: #{tpu_custom_call.1} parent=11 // pred_fallthru
          _
      $region12: #{tpu_custom_call.1} parent=5 // pred_fallthru
        _
      %p412 = scmp.lt.s32.totalorder %s25, 2
      // Predicated region
      $region61: #{tpu_custom_call.1} parent=5 // pred_check
        %p413 = pneg %p412
      $region62: #{tpu_custom_call.1} parent=5 // pred_check_branch
        %415 = sbr.rel (%p413) target = $region64
      $region63: #{tpu_custom_call.1} parent=5 // pred_region
        // Predicated region
        $region65: #{tpu_custom_call.1} parent=63 // pred_check
          %p416 = pneg %p45
        $region66: #{tpu_custom_call.1} parent=63 // pred_check_branch
          %418 = sbr.rel (%p416) target = $region68
        $region67: #{tpu_custom_call.1} parent=63 // pred_region
          %p419 = scmp.lt.s32.totalorder %s25, 1
          %s420 = scalar_select %p419, %s25, 1
          %s421 = smul.addr %s420, 8
          %s422 = scalar_lea.vmem %s0, %s421
        $region68: #{tpu_custom_call.1} parent=63 // pred_fallthru
          _
      $region64: #{tpu_custom_call.1} parent=5 // pred_fallthru
        _
      %p423 = scmp.le.s32.totalorder 1, %s25
      %p424 = scmp.lt.s32.totalorder %s25, 3
      %p425 = pnand %p423, %p424
      %p426 = pneg %p425
      // Predicated region
      $region69: #{tpu_custom_call.1} parent=5 // pred_check
        _
      $region70: #{tpu_custom_call.1} parent=5 // pred_check_branch
        %428 = sbr.rel (%p425) target = $region72
      $region71: #{tpu_custom_call.1} parent=5 // pred_region
        %s429 = ssub.s32 %s25, 1
        // Predicated region
        $region73: #{tpu_custom_call.1} parent=71 // pred_check
          %p430 = pneg %p135
        $region74: #{tpu_custom_call.1} parent=71 // pred_check_branch
          %432 = sbr.rel (%p430) target = $region76
        $region75: #{tpu_custom_call.1} parent=71 // pred_region
          %433 = dma.done [#allocation4], 16
        $region76: #{tpu_custom_call.1} parent=71 // pred_fallthru
          _
        // Predicated region
        $region77: #{tpu_custom_call.1} parent=71 // pred_check
          %p434 = pneg %p177
        $region78: #{tpu_custom_call.1} parent=71 // pred_check_branch
          %436 = sbr.rel (%p434) target = $region80
        $region79: #{tpu_custom_call.1} parent=71 // pred_region
          %437 = dma.done [#allocation7], 16
        $region80: #{tpu_custom_call.1} parent=71 // pred_fallthru
          _
        // Predicated region
        $region81: #{tpu_custom_call.1} parent=71 // pred_check
          %p438 = pneg %p198
        $region82: #{tpu_custom_call.1} parent=71 // pred_check_branch
          %440 = sbr.rel (%p438) target = $region84
        $region83: #{tpu_custom_call.1} parent=71 // pred_region
          %441 = dma.done [#allocation7], 16
        $region84: #{tpu_custom_call.1} parent=71 // pred_fallthru
          _
        // Predicated region
        $region85: #{tpu_custom_call.1} parent=71 // pred_check
          %p442 = pneg %p219
        $region86: #{tpu_custom_call.1} parent=71 // pred_check_branch
          %444 = sbr.rel (%p442) target = $region88
        $region87: #{tpu_custom_call.1} parent=71 // pred_region
          %445 = dma.done [#allocation10], 16
        $region88: #{tpu_custom_call.1} parent=71 // pred_fallthru
          _
        %p446 = scmp.lt.s32.totalorder %s30, 1
        %s447 = scalar_select %p446, %s30, 1
        %s448 = smul.addr %s447, 8
        %s449 = scalar_lea.vmem %s0, %s448
        %p450 = pneg %p51
        %p451 = pneg %p48
        %p452 = pneg %p72
        %p453 = pneg %p69
        %p454 = pneg %p93
        %p455 = pneg %p90
        %p456 = pneg %p114
        %p457 = pneg %p111
        %p458 = pneg %p135
        %p459 = pneg %p132
        %p460 = pneg %p156
        %p461 = pneg %p153
        %p462 = pneg %p177
        %p463 = pneg %p174
        %p464 = pneg %p198
        %p465 = pneg %p195
        %p466 = pneg %p219
        %p467 = pneg %p216
        %p468 = pneg %p240
        %p469 = pneg %p237
        %p470 = pneg %p261
        %p471 = pneg %p258
        %p472 = pneg %p282
        %p473 = pneg %p279
        %p474 = pneg %p303
        %p475 = pneg %p300
        %p476 = pneg %p329
        %p477 = pneg %p326
        %s478 = sand.u32 %s316, 1
        %s479 = scalar_lea.sflag [#allocation5], %s478
        %s480 = sand.u32 %s316, 1
        %s481 = smul.addr %s480, 8
        %s482 = scalar_lea.vmem [#allocation11], %s481
        %p483 = scmp.lt.s32.totalorder %s30, 1
        %s484 = scalar_select %p483, %s30, 1
        %s485 = smul.addr %s484, 8
        %s486 = scalar_lea.vmem %s0, %s485
        %v488 = vld [vmem:[%s486] sm:$0xff]
        %v489 = vld [vmem:[%s1] sm:$0x1]
        %v490 = vld [vmem:[%s2] sm:$0x1]
        %vm491 = vcmask 261120
        %v492 = vsel %vm491, %v488, 0.0
        %493 = vadd.xlane.f32.xlu0 %v492
        %v494 = vpop.xlane.xlu0 %493
        %v495 = vrcp.pop 32.0
        %v496 = vmul.f32 %v494, %v495
        %v497 = vsub.f32 %v488, %v496
        %v498 = vmul.f32 %v497, %v497
        %v499 = vsel %vm491, %v498, 0.0
        %500 = vadd.xlane.f32.xlu0 %v499
        %v501 = vpop.xlane.xlu0 %500
        %v502 = vmul.f32 %v501, %v495
        %v503 = vadd.f32 %v502, 1e-05
        %v504 = vrsqrt.pop %v503
        %v505 = vmul.f32 %v497, %v504
        %v507 = vlaneseq
        %v508 = vshrl.u32 %v507, 7
        %v509 = vsub.s32 0, %v508
        %v510 = vrot.slane %v489, %v509
        %v512 = vmul.f32 %v505, %v510
        %v514 = vlaneseq
        %v515 = vshrl.u32 %v514, 7
        %v516 = vsub.s32 0, %v515
        %v517 = vrot.slane %v490, %v516
        %v519 = vadd.f32 %v512, %v517
        %v520 = vpack.c.bf16 %v519, %v519
        %v521 = vld [vmem:[%s3] sm:$0xf]
        %v522 = vld [vmem:[%s3 + $0x4] sm:$0xf]
        %v523 = vld [vmem:[%s3 + $0x8] sm:$0xf]
        %v524 = vld [vmem:[%s3 + $0xc] sm:$0xf]
        %v525 = vld [vmem:[#allocation3] sm:$0x1]
        %v527 = vlaneseq
        %v528 = vshrl.u32 %v527, 7
        %v529 = vsub.s32 0, %v528
        %v530 = vrot.slane %v525, %v529
        %v536 = vunpack.c.l.b16 %v521
        %v537 = vunpack.c.l.b16 %v522
        %v538 = vunpack.c.l.b16 %v523
        %v539 = vunpack.c.l.b16 %v524
        %v540 = vpack.c.b16 %v537, %v536
        %v541 = vpack.c.b16 %v539, %v538
        %v545 = vsel %vm491, %v520, 0
        %547 = vmatprep.subr.bf16.mxu0 0
        %548 = vmatpush1.bf16.msra.mxu0 %v540
        %549 = vmatprep.subr.bf16.mxu0 0
        %550 = vmatpush1.bf16.msra.mxu0 %v541
        %551 = vmatprep.subr.bf16.mxu0 0
        %552 = vmatpush1.bf16.msra.mxu0 0
        %553 = vmatprep.subr.bf16.mxu0 0
        %554 = vmatpush1.bf16.msra.mxu0 0
        %555 = vmatprep.subr.bf16.mxu0 0
        %556 = vmatpush1.bf16.msra.mxu0 0
        %557 = vmatprep.subr.bf16.mxu0 0
        %558 = vmatpush1.bf16.msra.mxu0 0
        %559 = vmatprep.subr.bf16.mxu0 0
        %560 = vmatpush1.bf16.msra.mxu0 0
        %561 = vmatprep.subr.bf16.mxu0 0
        %562 = vmatpush1.bf16.msra.mxu0 0
        %563 = vmatprep.subr.bf16.mxu0 0
        %564 = vmatpush1.bf16.msra.mxu0 0
        %565 = vmatprep.subr.bf16.mxu0 0
        %566 = vmatpush1.bf16.msra.mxu0 0
        %567 = vmatprep.subr.bf16.mxu0 0
        %568 = vmatpush1.bf16.msra.mxu0 0
        %569 = vmatprep.subr.bf16.mxu0 0
        %570 = vmatpush1.bf16.msra.mxu0 0
        %571 = vmatprep.subr.bf16.mxu0 0
        %572 = vmatpush1.bf16.msra.mxu0 0
        %573 = vmatprep.subr.bf16.mxu0 0
        %574 = vmatpush1.bf16.msra.mxu0 0
        %575 = vmatprep.subr.bf16.mxu0 0
        %576 = vmatpush1.bf16.msra.mxu0 0
        %577 = vmatprep.subr.bf16.mxu0 0
        %578 = vmatpush1.bf16.msra.mxu0 0
        %579 = vmatprep.mubr.bf16.mxu0 0
        %580 = vmatmul.mubr.bf16.gmra.mrb[0].mxu0 %v545
        %v581 = vpop.f32.mrb[0].mxu0
        %v582 = vadd.f32 %v530, %v581
        %v583 = vpop.f32.mrb[0].mxu0
        %v584 = vpop.f32.mrb[0].mxu0
        %v585 = vpop.f32.mrb[0].mxu0
        %586 = vdwg.mxu0
        %v587 = vpack.c.bf16 %v582, %v582
        %589 = vrot.lane.b32.xlu0 %v582, 96
        %v590 = vpop.permute.xlu0 %589
        %592 = vxpose.xlu0.b32.start [1/16] %v590, 128
        %593 = vxpose.xlu0.b32.cont [2/16] 0.0, 128
        %594 = vxpose.xlu0.b32.cont [3/16] 0.0, 128
        %595 = vxpose.xlu0.b32.cont [4/16] 0.0, 128
        %596 = vxpose.xlu0.b32.cont [5/16] 0.0, 128
        %597 = vxpose.xlu0.b32.cont [6/16] 0.0, 128
        %598 = vxpose.xlu0.b32.cont [7/16] 0.0, 128
        %599 = vxpose.xlu0.b32.cont [8/16] 0.0, 128
        %600 = vxpose.xlu0.b32.cont [9/16] 0.0, 128
        %601 = vxpose.xlu0.b32.cont [10/16] 0.0, 128
        %602 = vxpose.xlu0.b32.cont [11/16] 0.0, 128
        %603 = vxpose.xlu0.b32.cont [12/16] 0.0, 128
        %604 = vxpose.xlu0.b32.cont [13/16] 0.0, 128
        %605 = vxpose.xlu0.b32.cont [14/16] 0.0, 128
        %606 = vxpose.xlu0.b32.cont [15/16] 0.0, 128
        %607 = vxpose.xlu0.b32.end [16/16] 0.0, 128
        %v608 = vpop.trf.xlu0
        %v609 = vpop.trf.xlu0
        %v610 = vpop.trf.xlu0
        %v611 = vpop.trf.xlu0
        %v612 = vpop.trf.xlu0
        %v613 = vpop.trf.xlu0
        %v614 = vpop.trf.xlu0
        %v615 = vpop.trf.xlu0
        %v616 = vpop.trf.xlu0
        %v617 = vpop.trf.xlu0
        %v618 = vpop.trf.xlu0
        %v619 = vpop.trf.xlu0
        %v620 = vpop.trf.xlu0
        %v621 = vpop.trf.xlu0
        %v622 = vpop.trf.xlu0
        %v623 = vpop.trf.xlu0
        %v624 = vpack.c.bf16 %v609, %v608
        %v625 = vpack.c.bf16 %v611, %v610
        %vm626 = vcmask 64512
        %v628 = vsel %vm626, %v587, 0
        %vm630 = vcmask 1043456
        %v632 = vsel %vm630, %v624, 0
        %634 = vmatprep.subr.bf16.mxu0 0
        %635 = vmatpush1.bf16.msra.mxu0 %v632
        %636 = vmatprep.subr.bf16.mxu0 0
        %637 = vmatpush1.bf16.msra.mxu0 0
        %638 = vmatprep.subr.bf16.mxu0 0
        %639 = vmatpush1.bf16.msra.mxu0 0
        %640 = vmatprep.subr.bf16.mxu0 0
        %641 = vmatpush1.bf16.msra.mxu0 0
        %642 = vmatprep.subr.bf16.mxu0 0
        %643 = vmatpush1.bf16.msra.mxu0 0
        %644 = vmatprep.subr.bf16.mxu0 0
        %645 = vmatpush1.bf16.msra.mxu0 0
        %646 = vmatprep.subr.bf16.mxu0 0
        %647 = vmatpush1.bf16.msra.mxu0 0
        %648 = vmatprep.subr.bf16.mxu0 0
        %649 = vmatpush1.bf16.msra.mxu0 0
        %650 = vmatprep.subr.bf16.mxu0 0
        %651 = vmatpush1.bf16.msra.mxu0 0
        %652 = vmatprep.subr.bf16.mxu0 0
        %653 = vmatpush1.bf16.msra.mxu0 0
        %654 = vmatprep.subr.bf16.mxu0 0
        %655 = vmatpush1.bf16.msra.mxu0 0
        %656 = vmatprep.subr.bf16.mxu0 0
        %657 = vmatpush1.bf16.msra.mxu0 0
        %658 = vmatprep.subr.bf16.mxu0 0
        %659 = vmatpush1.bf16.msra.mxu0 0
        %660 = vmatprep.subr.bf16.mxu0 0
        %661 = vmatpush1.bf16.msra.mxu0 0
        %662 = vmatprep.subr.bf16.mxu0 0
        %663 = vmatpush1.bf16.msra.mxu0 0
        %664 = vmatprep.subr.bf16.mxu0 0
        %665 = vmatpush1.bf16.msra.mxu0 0
        %666 = vmatprep.mubr.bf16.mxu0 0
        %667 = vmatmul.mubr.bf16.gmra.mrb[0].mxu0 %v628
        %v668 = vpop.f32.mrb[0].mxu0
        %v669 = vadd.f32 0.0, %v668
        %v670 = vpop.f32.mrb[0].mxu0
        %v671 = vpop.f32.mrb[0].mxu0
        %v672 = vpop.f32.mrb[0].mxu0
        %673 = vdwg.mxu0
        %v674 = vmul.f32 %v669, 0.35355338
        %v675 = vsel %vm626, %v674, -inf
        %676 = vmax.xlane.f32.xlu0 %v675
        %v677 = vpop.xlane.xlu0 %676
        %v678 = vsub.f32 %v674, %v677
        %v679 = vmul.f32 %v678, 1.442695
        %v680 = vpow.pop %v679
        %v681 = vsel %vm626, %v680, 0.0
        %682 = vadd.xlane.f32.xlu0 %v681
        %v683 = vpop.xlane.xlu0 %682
        %v684 = vrcp.pop %v683
        %v685 = vmul.f32 %v680, %v684
        %v686 = vpack.c.bf16 %v685, %v685
        %688 = vrot.lane.b32.xlu0 %v587, 64
        %v689 = vpop.permute.xlu0 %688
        %v691 = vsel %vm626, %v686, 0
        %v694 = vsel %vm630, %v689, 0
        %696 = vmatprep.subr.bf16.mxu0 0
        %697 = vmatpush1.bf16.msra.mxu0 %v694
        %698 = vmatprep.subr.bf16.mxu0 0
        %699 = vmatpush1.bf16.msra.mxu0 0
        %700 = vmatprep.subr.bf16.mxu0 0
        %701 = vmatpush1.bf16.msra.mxu0 0
        %702 = vmatprep.subr.bf16.mxu0 0
        %703 = vmatpush1.bf16.msra.mxu0 0
        %704 = vmatprep.subr.bf16.mxu0 0
        %705 = vmatpush1.bf16.msra.mxu0 0
        %706 = vmatprep.subr.bf16.mxu0 0
        %707 = vmatpush1.bf16.msra.mxu0 0
        %708 = vmatprep.subr.bf16.mxu0 0
        %709 = vmatpush1.bf16.msra.mxu0 0
        %710 = vmatprep.subr.bf16.mxu0 0
        %711 = vmatpush1.bf16.msra.mxu0 0
        %712 = vmatprep.subr.bf16.mxu0 0
        %713 = vmatpush1.bf16.msra.mxu0 0
        %714 = vmatprep.subr.bf16.mxu0 0
        %715 = vmatpush1.bf16.msra.mxu0 0
        %716 = vmatprep.subr.bf16.mxu0 0
        %717 = vmatpush1.bf16.msra.mxu0 0
        %718 = vmatprep.subr.bf16.mxu0 0
        %719 = vmatpush1.bf16.msra.mxu0 0
        %720 = vmatprep.subr.bf16.mxu0 0
        %721 = vmatpush1.bf16.msra.mxu0 0
        %722 = vmatprep.subr.bf16.mxu0 0
        %723 = vmatpush1.bf16.msra.mxu0 0
        %724 = vmatprep.subr.bf16.mxu0 0
        %725 = vmatpush1.bf16.msra.mxu0 0
        %726 = vmatprep.subr.bf16.mxu0 0
        %727 = vmatpush1.bf16.msra.mxu0 0
        %728 = vmatprep.mubr.bf16.mxu0 0
        %729 = vmatmul.mubr.bf16.gmra.mrb[0].mxu0 %v691
        %v730 = vpop.f32.mrb[0].mxu0
        %v731 = vadd.f32 0.0, %v730
        %v732 = vpop.f32.mrb[0].mxu0
        %v733 = vpop.f32.mrb[0].mxu0
        %v734 = vpop.f32.mrb[0].mxu0
        %735 = vdwg.mxu0
        %v736 = vpack.c.bf16 %v731, %v731
        %vm737 = vcmask 60416
        %738 = vst.msk [vmem:[#allocation2] sm:$0xf] %vm737, %v736
        %739 = vrot.lane.b32.xlu0 %v587, 120
        %v740 = vpop.permute.xlu0 %739
        %v742 = vrot.slane %v624, 4
        %v744 = vsel %vm626, %v740, 0
        %v747 = vsel %vm630, %v742, 0
        %749 = vmatprep.subr.bf16.mxu0 0
        %750 = vmatpush1.bf16.msra.mxu0 %v747
        %751 = vmatprep.subr.bf16.mxu0 0
        %752 = vmatpush1.bf16.msra.mxu0 0
        %753 = vmatprep.subr.bf16.mxu0 0
        %754 = vmatpush1.bf16.msra.mxu0 0
        %755 = vmatprep.subr.bf16.mxu0 0
        %756 = vmatpush1.bf16.msra.mxu0 0
        %757 = vmatprep.subr.bf16.mxu0 0
        %758 = vmatpush1.bf16.msra.mxu0 0
        %759 = vmatprep.subr.bf16.mxu0 0
        %760 = vmatpush1.bf16.msra.mxu0 0
        %761 = vmatprep.subr.bf16.mxu0 0
        %762 = vmatpush1.bf16.msra.mxu0 0
        %763 = vmatprep.subr.bf16.mxu0 0
        %764 = vmatpush1.bf16.msra.mxu0 0
        %765 = vmatprep.subr.bf16.mxu0 0
        %766 = vmatpush1.bf16.msra.mxu0 0
        %767 = vmatprep.subr.bf16.mxu0 0
        %768 = vmatpush1.bf16.msra.mxu0 0
        %769 = vmatprep.subr.bf16.mxu0 0
        %770 = vmatpush1.bf16.msra.mxu0 0
        %771 = vmatprep.subr.bf16.mxu0 0
        %772 = vmatpush1.bf16.msra.mxu0 0
        %773 = vmatprep.subr.bf16.mxu0 0
        %774 = vmatpush1.bf16.msra.mxu0 0
        %775 = vmatprep.subr.bf16.mxu0 0
        %776 = vmatpush1.bf16.msra.mxu0 0
        %777 = vmatprep.subr.bf16.mxu0 0
        %778 = vmatpush1.bf16.msra.mxu0 0
        %779 = vmatprep.subr.bf16.mxu0 0
        %780 = vmatpush1.bf16.msra.mxu0 0
        %781 = vmatprep.mubr.bf16.mxu0 0
        %782 = vmatmul.mubr.bf16.gmra.mrb[0].mxu0 %v744
        %v783 = vpop.f32.mrb[0].mxu0
        %v784 = vadd.f32 0.0, %v783
        %v785 = vpop.f32.mrb[0].mxu0
        %v786 = vpop.f32.mrb[0].mxu0
        %v787 = vpop.f32.mrb[0].mxu0
        %788 = vdwg.mxu0
        %v789 = vmul.f32 %v784, 0.35355338
        %v790 = vsel %vm626, %v789, -inf
        %791 = vmax.xlane.f32.xlu0 %v790
        %v792 = vpop.xlane.xlu0 %791
        %v793 = vsub.f32 %v789, %v792
        %v794 = vmul.f32 %v793, 1.442695
        %v795 = vpow.pop %v794
        %v796 = vsel %vm626, %v795, 0.0
        %797 = vadd.xlane.f32.xlu0 %v796
        %v798 = vpop.xlane.xlu0 %797
        %v799 = vrcp.pop %v798
        %v800 = vmul.f32 %v795, %v799
        %v801 = vpack.c.bf16 %v800, %v800
        %802 = vrot.lane.b32.xlu0 %v587, 56
        %v803 = vpop.permute.xlu0 %802
        %v805 = vsel %vm626, %v801, 0
        %v808 = vsel %vm630, %v803, 0
        %810 = vmatprep.subr.bf16.mxu0 0
        %811 = vmatpush1.bf16.msra.mxu0 %v808
        %812 = vmatprep.subr.bf16.mxu0 0
        %813 = vmatpush1.bf16.msra.mxu0 0
        %814 = vmatprep.subr.bf16.mxu0 0
        %815 = vmatpush1.bf16.msra.mxu0 0
        %816 = vmatprep.subr.bf16.mxu0 0
        %817 = vmatpush1.bf16.msra.mxu0 0
        %818 = vmatprep.subr.bf16.mxu0 0
        %819 = vmatpush1.bf16.msra.mxu0 0
        %820 = vmatprep.subr.bf16.mxu0 0
        %821 = vmatpush1.bf16.msra.mxu0 0
        %822 = vmatprep.subr.bf16.mxu0 0
        %823 = vmatpush1.bf16.msra.mxu0 0
        %824 = vmatprep.subr.bf16.mxu0 0
        %825 = vmatpush1.bf16.msra.mxu0 0
        %826 = vmatprep.subr.bf16.mxu0 0
        %827 = vmatpush1.bf16.msra.mxu0 0
        %828 = vmatprep.subr.bf16.mxu0 0
        %829 = vmatpush1.bf16.msra.mxu0 0
        %830 = vmatprep.subr.bf16.mxu0 0
        %831 = vmatpush1.bf16.msra.mxu0 0
        %832 = vmatprep.subr.bf16.mxu0 0
        %833 = vmatpush1.bf16.msra.mxu0 0
        %834 = vmatprep.subr.bf16.mxu0 0
        %835 = vmatpush1.bf16.msra.mxu0 0
        %836 = vmatprep.subr.bf16.mxu0 0
        %837 = vmatpush1.bf16.msra.mxu0 0
        %838 = vmatprep.subr.bf16.mxu0 0
        %839 = vmatpush1.bf16.msra.mxu0 0
        %840 = vmatprep.subr.bf16.mxu0 0
        %841 = vmatpush1.bf16.msra.mxu0 0
        %842 = vmatprep.mubr.bf16.mxu0 0
        %843 = vmatmul.mubr.bf16.gmra.mrb[0].mxu0 %v805
        %v844 = vpop.f32.mrb[0].mxu0
        %v845 = vadd.f32 0.0, %v844
        %v846 = vpop.f32.mrb[0].mxu0
        %v847 = vpop.f32.mrb[0].mxu0
        %v848 = vpop.f32.mrb[0].mxu0
        %849 = vdwg.mxu0
        %v850 = vpack.c.bf16 %v845, %v845
        %v852 = vunpack.c.l.b16 %v850
        %v853 = vpack.c.b16 %v852, %v852
        %854 = vrot.lane.b32.xlu0 %v853, 8
        %v855 = vpop.permute.xlu0 %854
        %vm857 = vcmask 126016
        %858 = vst.msk [vmem:[#allocation2] sm:$0xf] %vm857, %v855
        %859 = vrot.lane.b32.xlu0 %v587, 112
        %v860 = vpop.permute.xlu0 %859
        %v862 = vsel %vm626, %v860, 0
        %v865 = vsel %vm630, %v625, 0
        %867 = vmatprep.subr.bf16.mxu0 0
        %868 = vmatpush1.bf16.msra.mxu0 %v865
        %869 = vmatprep.subr.bf16.mxu0 0
        %870 = vmatpush1.bf16.msra.mxu0 0
        %871 = vmatprep.subr.bf16.mxu0 0
        %872 = vmatpush1.bf16.msra.mxu0 0
        %873 = vmatprep.subr.bf16.mxu0 0
        %874 = vmatpush1.bf16.msra.mxu0 0
        %875 = vmatprep.subr.bf16.mxu0 0
        %876 = vmatpush1.bf16.msra.mxu0 0
        %877 = vmatprep.subr.bf16.mxu0 0
        %878 = vmatpush1.bf16.msra.mxu0 0
        %879 = vmatprep.subr.bf16.mxu0 0
        %880 = vmatpush1.bf16.msra.mxu0 0
        %881 = vmatprep.subr.bf16.mxu0 0
        %882 = vmatpush1.bf16.msra.mxu0 0
        %883 = vmatprep.subr.bf16.mxu0 0
        %884 = vmatpush1.bf16.msra.mxu0 0
        %885 = vmatprep.subr.bf16.mxu0 0
        %886 = vmatpush1.bf16.msra.mxu0 0
        %887 = vmatprep.subr.bf16.mxu0 0
        %888 = vmatpush1.bf16.msra.mxu0 0
        %889 = vmatprep.subr.bf16.mxu0 0
        %890 = vmatpush1.bf16.msra.mxu0 0
        %891 = vmatprep.subr.bf16.mxu0 0
        %892 = vmatpush1.bf16.msra.mxu0 0
        %893 = vmatprep.subr.bf16.mxu0 0
        %894 = vmatpush1.bf16.msra.mxu0 0
        %895 = vmatprep.subr.bf16.mxu0 0
        %896 = vmatpush1.bf16.msra.mxu0 0
        %897 = vmatprep.subr.bf16.mxu0 0
        %898 = vmatpush1.bf16.msra.mxu0 0
        %899 = vmatprep.mubr.bf16.mxu0 0
        %900 = vmatmul.mubr.bf16.gmra.mrb[0].mxu0 %v862
        %v901 = vpop.f32.mrb[0].mxu0
        %v902 = vadd.f32 0.0, %v901
        %v903 = vpop.f32.mrb[0].mxu0
        %v904 = vpop.f32.mrb[0].mxu0
        %v905 = vpop.f32.mrb[0].mxu0
        %906 = vdwg.mxu0
        %v907 = vmul.f32 %v902, 0.35355338
        %v908 = vsel %vm626, %v907, -inf
        %909 = vmax.xlane.f32.xlu0 %v908
        %v910 = vpop.xlane.xlu0 %909
        %v911 = vsub.f32 %v907, %v910
        %v912 = vmul.f32 %v911, 1.442695
        %v913 = vpow.pop %v912
        %v914 = vsel %vm626, %v913, 0.0
        %915 = vadd.xlane.f32.xlu0 %v914
        %v916 = vpop.xlane.xlu0 %915
        %v917 = vrcp.pop %v916
        %v918 = vmul.f32 %v913, %v917
        %v919 = vpack.c.bf16 %v918, %v918
        %920 = vrot.lane.b32.xlu0 %v587, 48
        %v921 = vpop.permute.xlu0 %920
        %v923 = vsel %vm626, %v919, 0
        %v926 = vsel %vm630, %v921, 0
        %928 = vmatprep.subr.bf16.mxu0 0
        %929 = vmatpush1.bf16.msra.mxu0 %v926
        %930 = vmatprep.subr.bf16.mxu0 0
        %931 = vmatpush1.bf16.msra.mxu0 0
        %932 = vmatprep.subr.bf16.mxu0 0
        %933 = vmatpush1.bf16.msra.mxu0 0
        %934 = vmatprep.subr.bf16.mxu0 0
        %935 = vmatpush1.bf16.msra.mxu0 0
        %936 = vmatprep.subr.bf16.mxu0 0
        %937 = vmatpush1.bf16.msra.mxu0 0
        %938 = vmatprep.subr.bf16.mxu0 0
        %939 = vmatpush1.bf16.msra.mxu0 0
        %940 = vmatprep.subr.bf16.mxu0 0
        %941 = vmatpush1.bf16.msra.mxu0 0
        %942 = vmatprep.subr.bf16.mxu0 0
        %943 = vmatpush1.bf16.msra.mxu0 0
        %944 = vmatprep.subr.bf16.mxu0 0
        %945 = vmatpush1.bf16.msra.mxu0 0
        %946 = vmatprep.subr.bf16.mxu0 0
        %947 = vmatpush1.bf16.msra.mxu0 0
        %948 = vmatprep.subr.bf16.mxu0 0
        %949 = vmatpush1.bf16.msra.mxu0 0
        %950 = vmatprep.subr.bf16.mxu0 0
        %951 = vmatpush1.bf16.msra.mxu0 0
        %952 = vmatprep.subr.bf16.mxu0 0
        %953 = vmatpush1.bf16.msra.mxu0 0
        %954 = vmatprep.subr.bf16.mxu0 0
        %955 = vmatpush1.bf16.msra.mxu0 0
        %956 = vmatprep.subr.bf16.mxu0 0
        %957 = vmatpush1.bf16.msra.mxu0 0
        %958 = vmatprep.subr.bf16.mxu0 0
        %959 = vmatpush1.bf16.msra.mxu0 0
        %960 = vmatprep.mubr.bf16.mxu0 0
        %961 = vmatmul.mubr.bf16.gmra.mrb[0].mxu0 %v923
        %v962 = vpop.f32.mrb[0].mxu0
        %v963 = vadd.f32 0.0, %v962
        %v964 = vpop.f32.mrb[0].mxu0
        %v965 = vpop.f32.mrb[0].mxu0
        %v966 = vpop.f32.mrb[0].mxu0
        %967 = vdwg.mxu0
        %v968 = vpack.c.bf16 %v963, %v963
        %v970 = vunpack.c.l.b16 %v968
        %v971 = vpack.c.b16 %v970, %v970
        %972 = vrot.lane.b32.xlu0 %v971, 16
        %v973 = vpop.permute.xlu0 %972
        %vm975 = vcmask 191616
        %976 = vst.msk [vmem:[#allocation2] sm:$0xf] %vm975, %v973
        %977 = vrot.lane.b32.xlu0 %v587, 104
        %v978 = vpop.permute.xlu0 %977
        %v980 = vrot.slane %v625, 4
        %v982 = vsel %vm626, %v978, 0
        %v985 = vsel %vm630, %v980, 0
        %987 = vmatprep.subr.bf16.mxu0 0
        %988 = vmatpush1.bf16.msra.mxu0 %v985
        %989 = vmatprep.subr.bf16.mxu0 0
        %990 = vmatpush1.bf16.msra.mxu0 0
        %991 = vmatprep.subr.bf16.mxu0 0
        %992 = vmatpush1.bf16.msra.mxu0 0
        %993 = vmatprep.subr.bf16.mxu0 0
        %994 = vmatpush1.bf16.msra.mxu0 0
        %995 = vmatprep.subr.bf16.mxu0 0
        %996 = vmatpush1.bf16.msra.mxu0 0
        %997 = vmatprep.subr.bf16.mxu0 0
        %998 = vmatpush1.bf16.msra.mxu0 0
        %999 = vmatprep.subr.bf16.mxu0 0
        %1000 = vmatpush1.bf16.msra.mxu0 0
        %1001 = vmatprep.subr.bf16.mxu0 0
        %1002 = vmatpush1.bf16.msra.mxu0 0
        %1003 = vmatprep.subr.bf16.mxu0 0
        %1004 = vmatpush1.bf16.msra.mxu0 0
        %1005 = vmatprep.subr.bf16.mxu0 0
        %1006 = vmatpush1.bf16.msra.mxu0 0
        %1007 = vmatprep.subr.bf16.mxu0 0
        %1008 = vmatpush1.bf16.msra.mxu0 0
        %1009 = vmatprep.subr.bf16.mxu0 0
        %1010 = vmatpush1.bf16.msra.mxu0 0
        %1011 = vmatprep.subr.bf16.mxu0 0
        %1012 = vmatpush1.bf16.msra.mxu0 0
        %1013 = vmatprep.subr.bf16.mxu0 0
        %1014 = vmatpush1.bf16.msra.mxu0 0
        %1015 = vmatprep.subr.bf16.mxu0 0
        %1016 = vmatpush1.bf16.msra.mxu0 0
        %1017 = vmatprep.subr.bf16.mxu0 0
        %1018 = vmatpush1.bf16.msra.mxu0 0
        %1019 = vmatprep.mubr.bf16.mxu0 0
        %1020 = vmatmul.mubr.bf16.gmra.mrb[0].mxu0 %v982
        %v1021 = vpop.f32.mrb[0].mxu0
        %v1022 = vadd.f32 0.0, %v1021
        %v1023 = vpop.f32.mrb[0].mxu0
        %v1024 = vpop.f32.mrb[0].mxu0
        %v1025 = vpop.f32.mrb[0].mxu0
        %1026 = vdwg.mxu0
        %v1027 = vmul.f32 %v1022, 0.35355338
        %v1028 = vsel %vm626, %v1027, -inf
        %1029 = vmax.xlane.f32.xlu0 %v1028
        %v1030 = vpop.xlane.xlu0 %1029
        %v1031 = vsub.f32 %v1027, %v1030
        %v1032 = vmul.f32 %v1031, 1.442695
        %v1033 = vpow.pop %v1032
        %v1034 = vsel %vm626, %v1033, 0.0
        %1035 = vadd.xlane.f32.xlu0 %v1034
        %v1036 = vpop.xlane.xlu0 %1035
        %v1037 = vrcp.pop %v1036
        %v1038 = vmul.f32 %v1033, %v1037
        %v1039 = vpack.c.bf16 %v1038, %v1038
        %1040 = vrot.lane.b32.xlu0 %v587, 40
        %v1041 = vpop.permute.xlu0 %1040
        %v1043 = vsel %vm626, %v1039, 0
        %v1046 = vsel %vm630, %v1041, 0
        %1048 = vmatprep.subr.bf16.mxu0 0
        %1049 = vmatpush1.bf16.msra.mxu0 %v1046
        %1050 = vmatprep.subr.bf16.mxu0 0
        %1051 = vmatpush1.bf16.msra.mxu0 0
        %1052 = vmatprep.subr.bf16.mxu0 0
        %1053 = vmatpush1.bf16.msra.mxu0 0
        %1054 = vmatprep.subr.bf16.mxu0 0
        %1055 = vmatpush1.bf16.msra.mxu0 0
        %1056 = vmatprep.subr.bf16.mxu0 0
        %1057 = vmatpush1.bf16.msra.mxu0 0
        %1058 = vmatprep.subr.bf16.mxu0 0
        %1059 = vmatpush1.bf16.msra.mxu0 0
        %1060 = vmatprep.subr.bf16.mxu0 0
        %1061 = vmatpush1.bf16.msra.mxu0 0
        %1062 = vmatprep.subr.bf16.mxu0 0
        %1063 = vmatpush1.bf16.msra.mxu0 0
        %1064 = vmatprep.subr.bf16.mxu0 0
        %1065 = vmatpush1.bf16.msra.mxu0 0
        %1066 = vmatprep.subr.bf16.mxu0 0
        %1067 = vmatpush1.bf16.msra.mxu0 0
        %1068 = vmatprep.subr.bf16.mxu0 0
        %1069 = vmatpush1.bf16.msra.mxu0 0
        %1070 = vmatprep.subr.bf16.mxu0 0
        %1071 = vmatpush1.bf16.msra.mxu0 0
        %1072 = vmatprep.subr.bf16.mxu0 0
        %1073 = vmatpush1.bf16.msra.mxu0 0
        %1074 = vmatprep.subr.bf16.mxu0 0
        %1075 = vmatpush1.bf16.msra.mxu0 0
        %1076 = vmatprep.subr.bf16.mxu0 0
        %1077 = vmatpush1.bf16.msra.mxu0 0
        %1078 = vmatprep.subr.bf16.mxu0 0
        %1079 = vmatpush1.bf16.msra.mxu0 0
        %1080 = vmatprep.mubr.bf16.mxu0 0
        %1081 = vmatmul.mubr.bf16.gmra.mrb[0].mxu0 %v1043
        %v1082 = vpop.f32.mrb[0].mxu0
        %v1083 = vadd.f32 0.0, %v1082
        %v1084 = vpop.f32.mrb[0].mxu0
        %v1085 = vpop.f32.mrb[0].mxu0
        %v1086 = vpop.f32.mrb[0].mxu0
        %1087 = vdwg.mxu0
        %v1088 = vpack.c.bf16 %v1083, %v1083
        %v1090 = vunpack.c.l.b16 %v1088
        %v1091 = vpack.c.b16 %v1090, %v1090
        %1092 = vrot.lane.b32.xlu0 %v1091, 24
        %v1093 = vpop.permute.xlu0 %1092
        %vm1095 = vcmask 257216
        %1096 = vst.msk [vmem:[#allocation2] sm:$0xf] %vm1095, %v1093
        %v1097 = vld [vmem:[#allocation2] sm:$0xf]
        %v1098 = vld [vmem:[%s5] sm:$0xf]
        %v1099 = vld [vmem:[%s5 + $0x4] sm:$0xf]
        %v1100 = vld [vmem:[%s5 + $0x8] sm:$0xf]
        %v1101 = vld [vmem:[%s5 + $0xc] sm:$0xf]
        %v1102 = vld [vmem:[#allocation6] sm:$0x1]
        %v1104 = vlaneseq
        %v1105 = vshrl.u32 %v1104, 7
        %v1106 = vsub.s32 0, %v1105
        %v1107 = vrot.slane %v1102, %v1106
        %v1113 = vunpack.c.l.b16 %v1098
        %v1114 = vunpack.c.l.b16 %v1099
        %v1115 = vunpack.c.l.b16 %v1100
        %v1116 = vunpack.c.l.b16 %v1101
        %v1117 = vpack.c.b16 %v1114, %v1113
        %v1118 = vpack.c.b16 %v1116, %v1115
        %v1122 = vsel %vm491, %v1097, 0
        %1124 = vmatprep.subr.bf16.mxu0 0
        %1125 = vmatpush1.bf16.msra.mxu0 %v1117
        %1126 = vmatprep.subr.bf16.mxu0 0
        %1127 = vmatpush1.bf16.msra.mxu0 %v1118
        %1128 = vmatprep.subr.bf16.mxu0 0
        %1129 = vmatpush1.bf16.msra.mxu0 0
        %1130 = vmatprep.subr.bf16.mxu0 0
        %1131 = vmatpush1.bf16.msra.mxu0 0
        %1132 = vmatprep.subr.bf16.mxu0 0
        %1133 = vmatpush1.bf16.msra.mxu0 0
        %1134 = vmatprep.subr.bf16.mxu0 0
        %1135 = vmatpush1.bf16.msra.mxu0 0
        %1136 = vmatprep.subr.bf16.mxu0 0
        %1137 = vmatpush1.bf16.msra.mxu0 0
        %1138 = vmatprep.subr.bf16.mxu0 0
        %1139 = vmatpush1.bf16.msra.mxu0 0
        %1140 = vmatprep.subr.bf16.mxu0 0
        %1141 = vmatpush1.bf16.msra.mxu0 0
        %1142 = vmatprep.subr.bf16.mxu0 0
        %1143 = vmatpush1.bf16.msra.mxu0 0
        %1144 = vmatprep.subr.bf16.mxu0 0
        %1145 = vmatpush1.bf16.msra.mxu0 0
        %1146 = vmatprep.subr.bf16.mxu0 0
        %1147 = vmatpush1.bf16.msra.mxu0 0
        %1148 = vmatprep.subr.bf16.mxu0 0
        %1149 = vmatpush1.bf16.msra.mxu0 0
        %1150 = vmatprep.subr.bf16.mxu0 0
        %1151 = vmatpush1.bf16.msra.mxu0 0
        %1152 = vmatprep.subr.bf16.mxu0 0
        %1153 = vmatpush1.bf16.msra.mxu0 0
        %1154 = vmatprep.subr.bf16.mxu0 0
        %1155 = vmatpush1.bf16.msra.mxu0 0
        %1156 = vmatprep.mubr.bf16.mxu0 0
        %1157 = vmatmul.mubr.bf16.gmra.mrb[0].mxu0 %v1122
        %v1158 = vpop.f32.mrb[0].mxu0
        %v1159 = vadd.f32 %v1107, %v1158
        %v1160 = vpop.f32.mrb[0].mxu0
        %v1161 = vpop.f32.mrb[0].mxu0
        %v1162 = vpop.f32.mrb[0].mxu0
        %1163 = vdwg.mxu0
        %v1164 = vadd.f32 %v1159, %v488
        %v1165 = vld [vmem:[#allocation8] sm:$0x1]
        %v1166 = vld [vmem:[#allocation9] sm:$0x1]
        %v1167 = vsel %vm491, %v1164, 0.0
        %1168 = vadd.xlane.f32.xlu0 %v1167
        %v1169 = vpop.xlane.xlu0 %1168
        %v1170 = vmul.f32 %v1169, %v495
        %v1171 = vsub.f32 %v1164, %v1170
        %v1172 = vmul.f32 %v1171, %v1171
        %v1173 = vsel %vm491, %v1172, 0.0
        %1174 = vadd.xlane.f32.xlu0 %v1173
        %v1175 = vpop.xlane.xlu0 %1174
        %v1176 = vmul.f32 %v1175, %v495
        %v1177 = vadd.f32 %v1176, 1e-05
        %v1178 = vrsqrt.pop %v1177
        %v1179 = vmul.f32 %v1171, %v1178
        %v1181 = vlaneseq
        %v1182 = vshrl.u32 %v1181, 7
        %v1183 = vsub.s32 0, %v1182
        %v1184 = vrot.slane %v1165, %v1183
        %v1186 = vmul.f32 %v1179, %v1184
        %v1188 = vlaneseq
        %v1189 = vshrl.u32 %v1188, 7
        %v1190 = vsub.s32 0, %v1189
        %v1191 = vrot.slane %v1166, %v1190
        %v1193 = vadd.f32 %v1186, %v1191
        %v1194 = vpack.c.bf16 %v1193, %v1193
        %v1195 = vld [vmem:[%s9] sm:$0xf]
        %v1196 = vld [vmem:[%s9 + $0x4] sm:$0xf]
        %v1197 = vld [vmem:[%s9 + $0x8] sm:$0xf]
        %v1198 = vld [vmem:[%s9 + $0xc] sm:$0xf]
        %v1199 = vld [vmem:[%s10] sm:$0x1]
        %v1201 = vlaneseq
        %v1202 = vshrl.u32 %v1201, 7
        %v1203 = vsub.s32 0, %v1202
        %v1204 = vrot.slane %v1199, %v1203
        %v1210 = vunpack.c.l.b16 %v1195
        %v1211 = vunpack.c.l.b16 %v1196
        %v1212 = vunpack.c.l.b16 %v1197
        %v1213 = vunpack.c.l.b16 %v1198
        %v1214 = vpack.c.b16 %v1211, %v1210
        %v1215 = vpack.c.b16 %v1213, %v1212
        %v1219 = vsel %vm491, %v1194, 0
        %1221 = vmatprep.subr.bf16.mxu0 0
        %1222 = vmatpush1.bf16.msra.mxu0 %v1214
        %1223 = vmatprep.subr.bf16.mxu0 0
        %1224 = vmatpush1.bf16.msra.mxu0 %v1215
        %1225 = vmatprep.subr.bf16.mxu0 0
        %1226 = vmatpush1.bf16.msra.mxu0 0
        %1227 = vmatprep.subr.bf16.mxu0 0
        %1228 = vmatpush1.bf16.msra.mxu0 0
        %1229 = vmatprep.subr.bf16.mxu0 0
        %1230 = vmatpush1.bf16.msra.mxu0 0
        %1231 = vmatprep.subr.bf16.mxu0 0
        %1232 = vmatpush1.bf16.msra.mxu0 0
        %1233 = vmatprep.subr.bf16.mxu0 0
        %1234 = vmatpush1.bf16.msra.mxu0 0
        %1235 = vmatprep.subr.bf16.mxu0 0
        %1236 = vmatpush1.bf16.msra.mxu0 0
        %1237 = vmatprep.subr.bf16.mxu0 0
        %1238 = vmatpush1.bf16.msra.mxu0 0
        %1239 = vmatprep.subr.bf16.mxu0 0
        %1240 = vmatpush1.bf16.msra.mxu0 0
        %1241 = vmatprep.subr.bf16.mxu0 0
        %1242 = vmatpush1.bf16.msra.mxu0 0
        %1243 = vmatprep.subr.bf16.mxu0 0
        %1244 = vmatpush1.bf16.msra.mxu0 0
        %1245 = vmatprep.subr.bf16.mxu0 0
        %1246 = vmatpush1.bf16.msra.mxu0 0
        %1247 = vmatprep.subr.bf16.mxu0 0
        %1248 = vmatpush1.bf16.msra.mxu0 0
        %1249 = vmatprep.subr.bf16.mxu0 0
        %1250 = vmatpush1.bf16.msra.mxu0 0
        %1251 = vmatprep.subr.bf16.mxu0 0
        %1252 = vmatpush1.bf16.msra.mxu0 0
        %1253 = vmatprep.mubr.bf16.mxu0 0
        %1254 = vmatmul.mubr.bf16.gmra.mrb[0].mxu0 %v1219
        %v1255 = vpop.f32.mrb[0].mxu0
        %v1256 = vadd.f32 %v1204, %v1255
        %v1257 = vpop.f32.mrb[0].mxu0
        %v1258 = vpop.f32.mrb[0].mxu0
        %v1259 = vpop.f32.mrb[0].mxu0
        %1260 = vdwg.mxu0
        %v1261 = vmul.f32 %v1256, 0.5
        %v1262 = vmul.f32 %v1256, 0.70710677
        %v1263 = verf.f32.pop %v1262
        %v1264 = vadd.f32 %v1263, 1.0
        %v1265 = vmul.f32 %v1261, %v1264
        %v1266 = vpack.c.bf16 %v1265, %v1265
        %v1267 = vld [vmem:[%s11] sm:$0xf]
        %v1268 = vld [vmem:[%s11 + $0x4] sm:$0xf]
        %v1269 = vld [vmem:[%s11 + $0x8] sm:$0xf]
        %v1270 = vld [vmem:[%s11 + $0xc] sm:$0xf]
        %v1271 = vld [vmem:[%s11 + $0x10] sm:$0xf]
        %v1272 = vld [vmem:[%s11 + $0x14] sm:$0xf]
        %v1273 = vld [vmem:[%s11 + $0x18] sm:$0xf]
        %v1274 = vld [vmem:[%s11 + $0x1c] sm:$0xf]
        %v1275 = vld [vmem:[%s12] sm:$0x1]
        %v1277 = vlaneseq
        %v1278 = vshrl.u32 %v1277, 7
        %v1279 = vsub.s32 0, %v1278
        %v1280 = vrot.slane %v1275, %v1279
        %v1290 = vunpack.c.l.b16 %v1267
        %v1291 = vunpack.c.l.b16 %v1268
        %v1292 = vunpack.c.l.b16 %v1269
        %v1293 = vunpack.c.l.b16 %v1270
        %v1294 = vunpack.c.l.b16 %v1271
        %v1295 = vunpack.c.l.b16 %v1272
        %v1296 = vunpack.c.l.b16 %v1273
        %v1297 = vunpack.c.l.b16 %v1274
        %v1298 = vpack.c.b16 %v1291, %v1290
        %v1299 = vpack.c.b16 %v1293, %v1292
        %v1300 = vpack.c.b16 %v1295, %v1294
        %v1301 = vpack.c.b16 %v1297, %v1296
        %vm1306 = vcmask 523264
        %v1308 = vsel %vm1306, %v1266, 0
        %1310 = vmatprep.subr.bf16.mxu0 0
        %1311 = vmatpush1.bf16.msra.mxu0 %v1298
        %1312 = vmatprep.subr.bf16.mxu0 0
        %1313 = vmatpush1.bf16.msra.mxu0 %v1299
        %1314 = vmatprep.subr.bf16.mxu0 0
        %1315 = vmatpush1.bf16.msra.mxu0 %v1300
        %1316 = vmatprep.subr.bf16.mxu0 0
        %1317 = vmatpush1.bf16.msra.mxu0 %v1301
        %1318 = vmatprep.subr.bf16.mxu0 0
        %1319 = vmatpush1.bf16.msra.mxu0 0
        %1320 = vmatprep.subr.bf16.mxu0 0
        %1321 = vmatpush1.bf16.msra.mxu0 0
        %1322 = vmatprep.subr.bf16.mxu0 0
        %1323 = vmatpush1.bf16.msra.mxu0 0
        %1324 = vmatprep.subr.bf16.mxu0 0
        %1325 = vmatpush1.bf16.msra.mxu0 0
        %1326 = vmatprep.subr.bf16.mxu0 0
        %1327 = vmatpush1.bf16.msra.mxu0 0
        %1328 = vmatprep.subr.bf16.mxu0 0
        %1329 = vmatpush1.bf16.msra.mxu0 0
        %1330 = vmatprep.subr.bf16.mxu0 0
        %1331 = vmatpush1.bf16.msra.mxu0 0
        %1332 = vmatprep.subr.bf16.mxu0 0
        %1333 = vmatpush1.bf16.msra.mxu0 0
        %1334 = vmatprep.subr.bf16.mxu0 0
        %1335 = vmatpush1.bf16.msra.mxu0 0
        %1336 = vmatprep.subr.bf16.mxu0 0
        %1337 = vmatpush1.bf16.msra.mxu0 0
        %1338 = vmatprep.subr.bf16.mxu0 0
        %1339 = vmatpush1.bf16.msra.mxu0 0
        %1340 = vmatprep.subr.bf16.mxu0 0
        %1341 = vmatpush1.bf16.msra.mxu0 0
        %1342 = vmatprep.mubr.bf16.mxu0 0
        %1343 = vmatmul.mubr.bf16.gmra.mrb[0].mxu0 %v1308
        %v1344 = vpop.f32.mrb[0].mxu0
        %v1345 = vadd.f32 %v1280, %v1344
        %v1346 = vpop.f32.mrb[0].mxu0
        %v1347 = vpop.f32.mrb[0].mxu0
        %v1348 = vpop.f32.mrb[0].mxu0
        %1349 = vdwg.mxu0
        %v1350 = vadd.f32 %v1345, %v1164
        %1351 = vst.msk [vmem:[%s482] sm:$0xff] %vm491, %v1350
        %s1352 = sand.u32 %s316, 1
        %s1353 = scalar_lea.sflag [#allocation5], %s1352
        %s1354 = sand.u32 %s316, 1
        %s1355 = smul.addr %s1354, 8
        %s1356 = scalar_lea.vmem [#allocation11], %s1355
        // Predicated region
        $region89: #{tpu_custom_call.1} parent=71 // pred_check
          %p1357 = pneg %p326
        $region90: #{tpu_custom_call.1} parent=71 // pred_check_branch
          %1359 = sbr.rel (%p1357) target = $region92
        $region91: #{tpu_custom_call.1} parent=71 // pred_region
          %s1361 = ssub.s32 128, 128
          %1362 = vsyncadd %s1353, %s1361
          %s1363 = smul.addr %s30, 128
          %s1364 = scalar_lea.hbm %s13, %s1363
          %s1366 = sshll.u32 %s1356, 4
          %s1367 = int_to_ptr.vmem [resolvable:$true] %s1366
          %1369 = dma.vmem_to_hbm [thread:$0]  %s1367, 128, %s1364, %s1353
        $region92: #{tpu_custom_call.1} parent=71 // pred_fallthru
          _
      $region72: #{tpu_custom_call.1} parent=5 // pred_fallthru
        _
      %p1370 = scmp.le.s32.totalorder 2, %s25
      // Predicated region
      $region93: #{tpu_custom_call.1} parent=5 // pred_check
        %p1371 = pneg %p1370
      $region94: #{tpu_custom_call.1} parent=5 // pred_check_branch
        %1373 = sbr.rel (%p1371) target = $region96
      $region95: #{tpu_custom_call.1} parent=5 // pred_region
        %s1374 = ssub.s32 %s25, 2
        // Predicated region
        $region97: #{tpu_custom_call.1} parent=95 // pred_check
          %p1375 = pneg %p332
        $region98: #{tpu_custom_call.1} parent=95 // pred_check_branch
          %1377 = sbr.rel (%p1375) target = $region100
        $region99: #{tpu_custom_call.1} parent=95 // pred_region
          %s1378 = sand.u32 %s317, 1
          %s1379 = scalar_lea.sflag [#allocation5], %s1378
          %s1380 = sand.u32 %s317, 1
          %s1381 = smul.addr %s1380, 8
          %s1382 = scalar_lea.vmem [#allocation11], %s1381
          %1383 = dma.done %s1379, 128
        $region100: #{tpu_custom_call.1} parent=95 // pred_fallthru
          _
      $region96: #{tpu_custom_call.1} parent=5 // pred_fallthru
        _
    $region6: #{tpu_custom_call.1} parent=1 // loop_footer
      %s29 = sadd.s32 1, %s25
    $region7: #{tpu_custom_call.1} parent=1 // loop_footer_branch
      %24 = sbr.rel target = $region3
    $region8: #{tpu_custom_call.1} parent=1 // loop_exit
      _
    %1384 = vsyncpa [#allocation4], 1
    %s1385 = scalar_lea.sflag [#allocation4], 1
    %1386 = vsyncpa %s1385, 1
    %1387 = vsyncpa [#allocation7], 1
    %1388 = vsyncpa [#allocation10], 1
    %1389 = vsyncpa [#allocation5], 1
    %s1390 = scalar_lea.sflag [#allocation5], 1
    %1391 = vsyncpa %s1390, 1

</llo_original>
